<compile_context>
chip_gen: v7x
topology: tpu7x:2x2x1
jax: 0.10.0
libtpu: 0.0.40
codegen_flags: <defaults>
</compile_context>

<pallas_src>
import math
import functools

import jax
import jax.numpy as jnp
from jax import lax
from jax.experimental import pallas as pl
from jax.experimental.pallas import tpu as pltpu


def _layer_norm(t, gamma, beta, eps):
    """Tutorial LayerNormalization: gamma*(t-mean)/(std+eps)+beta, unbiased std (N-1)."""
    n = t.shape[-1]
    mean = jnp.mean(t, axis=-1, keepdims=True)
    var = jnp.sum((t - mean) * (t - mean), axis=-1, keepdims=True) * (1.0 / (n - 1))
    std = jnp.sqrt(var)
    inv = pl.reciprocal(std + eps, approx=False)        # EUP reciprocal, no VALU divide
    return gamma * ((t - mean) * inv) + beta


def _heads_per_group(num_heads, head_dim):
    """Smallest divisor of num_heads whose group width reaches 128 lanes (else all heads)."""
    for c in range(1, num_heads + 1):
        if num_heads % c == 0 and c * head_dim >= 128:
            return c
    return num_heads


def _vmem_limit_bytes():
    """~75% of this generation's physical VMEM (leave pipeline headroom); None = default."""
    try:
        cap = getattr(pltpu.get_tpu_info(), "vmem_capacity_bytes", None)
        if cap:
            return int(cap) * 3 // 4
    except Exception:
        pass
    return None


def encoder_block_kernel(
    x_ref,        # (1, S, H)   f32  input block (one batch row), resident across groups
    bias_ref,     # (1, 1, S)   f32  additive mask bias: 0 = attend, -1e9 = masked
    wqkv_ref,     # (1, H, 3G)  bf16 this group's fused [Wq|Wk|Wv] slab (scale folded in Wq)
    wo_ref,       # (NG, G, H)  bf16 whole output-projection weight, grouped on rows
    g1_ref, b1_ref,     # (1, H) f32  LayerNorm 1 (alpha, bias)
    g2_ref, b2_ref,     # (1, H) f32  LayerNorm 2 (alpha, bias)
    w1_ref, fb1_ref,    # (H, F) bf16, (1, F) f32   FFN linear_1
    w2_ref, fb2_ref,    # (F, H) bf16, (1, H) f32   FFN linear_2
    out_ref,      # (1, S, H)   f32
    xn_ref,       # scratch (S, H)      bf16 : LN1(x), computed once per batch row
    ctx_ref,      # scratch (NG, S, G)  bf16 : per-group attention context slabs
    *, heads_per_group, head_dim, num_groups, ln_eps,
):
    g = pl.program_id(1)
    bf16 = jnp.bfloat16
    gd = heads_per_group * head_dim

    # ---- once per batch row: pre-norm LN1 ----
    @pl.when(g == 0)
    def _init():
        xn_ref[...] = _layer_norm(x_ref[0], g1_ref[...], b1_ref[...], ln_eps).astype(bf16)

    xn = xn_ref[...]                                                   # (S, H) bf16

    # ---- this head-group's fused QKV projection (lane-dense, one matmul) ----
    qkv = jnp.dot(xn, wqkv_ref[0], preferred_element_type=jnp.float32)  # (S, 3*G)
    q_all = qkv[:, :gd].astype(bf16)            # 1/sqrt(d_k) already folded into Wq
    k_all = qkv[:, gd:2 * gd].astype(bf16)
    v_all = qkv[:, 2 * gd:].astype(bf16)
    bias = bias_ref[0]                                                  # (1, S)

    parts = []
    for hh in range(heads_per_group):
        lo = hh * head_dim
        q = q_all[:, lo:lo + head_dim]
        k = k_all[:, lo:lo + head_dim]
        v = v_all[:, lo:lo + head_dim]
        # scores = q @ k^T, contracting last dims directly (no materialized transpose)
        scores = lax.dot_general(q, k, (((1,), (1,)), ((), ())),
                                 preferred_element_type=jnp.float32)    # (S, S)
        scores = scores + bias                      # additive mask (broadcast over rows)
        m = jnp.max(scores, axis=-1, keepdims=True)
        e = jnp.exp(scores - m)
        inv = pl.reciprocal(jnp.sum(e, axis=-1, keepdims=True), approx=True)
        # normalize AFTER the PV matmul: S*d multiplies instead of S^2
        ctx = jnp.dot(e.astype(bf16), v, preferred_element_type=jnp.float32) * inv
        parts.append(ctx.astype(bf16))

    ctx_ref[g] = jnp.concatenate(parts, axis=-1) if len(parts) > 1 else parts[0]

    # ---- once per batch row, after the last group: Wo + residual + LN2 + FFN + residual ----
    @pl.when(g == num_groups - 1)
    def _finalize():
        x = x_ref[0]                                                    # (S, H) f32
        attn = jnp.dot(ctx_ref[0], wo_ref[0], preferred_element_type=jnp.float32)
        for gg in range(1, num_groups):
            attn = attn + jnp.dot(ctx_ref[gg], wo_ref[gg],
                                  preferred_element_type=jnp.float32)
        y1 = x + attn                                                   # residual 1 (dropout=id)
        xn2 = _layer_norm(y1, g2_ref[...], b2_ref[...], ln_eps)
        hid = jnp.dot(xn2.astype(bf16), w1_ref[...],
                      preferred_element_type=jnp.float32) + fb1_ref[...]  # (S, F)
        hid = jnp.maximum(hid, 0.0)
        ffn = jnp.dot(hid.astype(bf16), w2_ref[...],
                      preferred_element_type=jnp.float32) + fb2_ref[...]  # (S, H)
        out_ref[0] = (y1 + ffn).astype(out_ref.dtype)                   # residual 2 (dropout=id)


def encoder_block(x, src_mask, params, *, num_heads, ln_eps=1e-6):
    """x: [B, S, H] f32; src_mask: [B, 1, 1, S] with 1 = attend, 0 = masked key."""
    B, S, H = x.shape
    assert H % num_heads == 0
    d = H // num_heads
    F = params["w1"].shape[0]
    bf16 = jnp.bfloat16

    hg = _heads_per_group(num_heads, d)     # heads per grid step (lane-dense group)
    ng = num_heads // hg
    gd = hg * d

    # --- one-time parameter prep (outside the kernel). nn.Linear stores W as (out, in);
    #     the kernel computes x @ W^T. 1/sqrt(d_k) folded into Wq. ---
    scale = 1.0 / math.sqrt(d)
    grp = lambda w: w.reshape(H, ng, gd).transpose(1, 0, 2)              # (NG, H, G)
    wq_g = grp(params["wq"].T * scale)
    wk_g = grp(params["wk"].T)
    wv_g = grp(params["wv"].T)
    wqkv = jnp.concatenate([wq_g, wk_g, wv_g], axis=-1).astype(bf16)     # (NG, H, 3G)
    wo_g = params["wo"].T.reshape(ng, gd, H).astype(bf16)                # (NG, G, H)
    w1 = params["w1"].T.astype(bf16)                                     # (H, F)
    w2 = params["w2"].T.astype(bf16)                                     # (F, H)
    row = lambda p: p.reshape(1, -1).astype(jnp.float32)

    # additive attention-mask bias: 0 where attend, -1e9 where masked
    bias3 = (src_mask.reshape(B, 1, S).astype(jnp.float32) - 1.0) * 1e9

    kernel = functools.partial(
        encoder_block_kernel,
        heads_per_group=hg, head_dim=d, num_groups=ng, ln_eps=ln_eps)

    per_batch = lambda shape: pl.BlockSpec(shape, lambda b, g: (b, 0, 0))
    per_group = lambda shape: pl.BlockSpec(shape, lambda b, g: (g, 0, 0))
    const2d = lambda shape: pl.BlockSpec(shape, lambda b, g: (0, 0))
    const3d = lambda shape: pl.BlockSpec(shape, lambda b, g: (0, 0, 0))

    return pl.pallas_call(
        kernel,
        out_shape=jax.ShapeDtypeStruct((B, S, H), jnp.float32),
        grid_spec=pltpu.PrefetchScalarGridSpec(
            num_scalar_prefetch=0,
            grid=(B, ng),
            in_specs=[
                per_batch((1, S, H)),                 # x
                per_batch((1, 1, S)),                 # additive mask bias
                per_group((1, H, 3 * gd)),            # fused QKV weights (this group)
                const3d((ng, gd, H)),                 # Wo (whole, grouped rows)
                const2d((1, H)), const2d((1, H)),     # LN1 alpha, bias
                const2d((1, H)), const2d((1, H)),     # LN2 alpha, bias
                const2d((H, F)), const2d((1, F)),     # FFN w1, b1
                const2d((F, H)), const2d((1, H)),     # FFN w2, b2
            ],
            out_specs=pl.BlockSpec((1, S, H), lambda b, g: (b, 0, 0)),
            scratch_shapes=[
                pltpu.VMEM((S, H), bf16),             # LN1(x)
                pltpu.VMEM((ng, S, gd), bf16),        # per-group attention context slabs
            ],
        ),
        compiler_params=pltpu.CompilerParams(
            dimension_semantics=("parallel", "arbitrary"),
            vmem_limit_bytes=_vmem_limit_bytes(),
        ),
    )(
        x, bias3, wqkv, wo_g,
        row(params["alpha1"]), row(params["bias1"]),
        row(params["alpha2"]), row(params["bias2"]),
        w1, row(params["b1"]),
        w2, row(params["b2"]),
    )


def encoder_block_reference(x, src_mask, params, *, num_heads, ln_eps=1e-6):
    """Pure-JAX f32 reference mirroring the PyTorch EncoderBlock (eval mode)."""
    B, S, H = x.shape
    d = H // num_heads

    def layer_norm(t, alpha, bias):
        mean = t.mean(-1, keepdims=True)
        var = ((t - mean) ** 2).sum(-1, keepdims=True) / (H - 1)   # torch.std: unbiased
        return alpha * (t - mean) / (jnp.sqrt(var) + ln_eps) + bias

    # self-attention sublayer (pre-norm residual)
    xn = layer_norm(x, params["alpha1"], params["bias1"])
    q = xn @ params["wq"].T
    k = xn @ params["wk"].T
    v = xn @ params["wv"].T
    split = lambda t: t.reshape(B, S, num_heads, d).transpose(0, 2, 1, 3)
    qh, kh, vh = split(q), split(k), split(v)
    scores = jnp.einsum("bhqd,bhkd->bhqk", qh, kh) / math.sqrt(d)
    scores = jnp.where(src_mask == 0, -1e9, scores)                # masked_fill
    probs = jax.nn.softmax(scores, axis=-1)
    ctx = jnp.einsum("bhqk,bhkd->bhqd", probs, vh).transpose(0, 2, 1, 3).reshape(B, S, H)
    x1 = x + ctx @ params["wo"].T

    # feed-forward sublayer (pre-norm residual)
    xn2 = layer_norm(x1, params["alpha2"], params["bias2"])
    hid = jnp.maximum(xn2 @ params["w1"].T + params["b1"], 0.0)
    return x1 + hid @ params["w2"].T + params["b2"]


if __name__ == "__main__":
    B, S, H, NH, F = 2, 8, 32, 4, 64      # batch, seq, d_model, heads, d_ff

    key = jax.random.PRNGKey(0)
    ks = jax.random.split(key, 16)
    init = lambda k, shape: (0.02 * jax.random.normal(k, shape)).astype(jnp.float32)

    params = {
        # attention linears (bias=False), stored PyTorch-style as (out, in)
        "wq": init(ks[0], (H, H)),
        "wk": init(ks[1], (H, H)),
        "wv": init(ks[2], (H, H)),
        "wo": init(ks[3], (H, H)),
        # feed-forward linears (with bias)
        "w1": init(ks[4], (F, H)), "b1": init(ks[5], (F,)),
        "w2": init(ks[6], (H, F)), "b2": init(ks[7], (H,)),
        # LayerNormalization params (alpha multiplies, bias adds)
        "alpha1": (1.0 + 0.1 * jax.random.normal(ks[8], (H,))).astype(jnp.float32),
        "bias1": (0.1 * jax.random.normal(ks[9], (H,))).astype(jnp.float32),
        "alpha2": (1.0 + 0.1 * jax.random.normal(ks[10], (H,))).astype(jnp.float32),
        "bias2": (0.1 * jax.random.normal(ks[11], (H,))).astype(jnp.float32),
    }

    x = jax.random.normal(ks[12], (B, S, H), dtype=jnp.float32)
    # src_mask: 1 = attend, 0 = masked key; keep at least one visible key per row.
    keep = (jax.random.uniform(ks[13], (B, S)) > 0.25).astype(jnp.float32)
    keep = keep.at[:, 0].set(1.0)
    src_mask = keep.reshape(B, 1, 1, S)

    out = encoder_block(x, src_mask, params, num_heads=NH)
    out = jax.block_until_ready(out)

    ref = encoder_block_reference(x, src_mask, params, num_heads=NH)
    assert out.shape == (B, S, H)
    max_err = float(jnp.max(jnp.abs(out - ref)))
    # bf16 MXU operands + approx EUP reciprocal vs. pure-f32 reference
    assert jnp.allclose(out, ref, atol=5e-3, rtol=5e-3), max_err

    print("KERNEL_OK")
</pallas_src>

<mosaic_0001>
module attributes {stable_mosaic.version = 11 : i64} {
  func.func @encoder_block_kernel(%arg0: i32, %arg1: i32, %arg2: memref<1x8x32xf32, #tpu.memory_space<vmem>>, %arg3: memref<1x1x8xf32, #tpu.memory_space<vmem>>, %arg4: memref<1x32x96xbf16, #tpu.memory_space<vmem>>, %arg5: memref<1x32x32xbf16, #tpu.memory_space<vmem>>, %arg6: memref<1x32xf32, #tpu.memory_space<vmem>>, %arg7: memref<1x32xf32, #tpu.memory_space<vmem>>, %arg8: memref<1x32xf32, #tpu.memory_space<vmem>>, %arg9: memref<1x32xf32, #tpu.memory_space<vmem>>, %arg10: memref<32x64xbf16, #tpu.memory_space<vmem>>, %arg11: memref<1x64xf32, #tpu.memory_space<vmem>>, %arg12: memref<64x32xbf16, #tpu.memory_space<vmem>>, %arg13: memref<1x32xf32, #tpu.memory_space<vmem>>, %arg14: memref<1x8x32xf32, #tpu.memory_space<vmem>>, %arg15: memref<8x32xbf16, #tpu.memory_space<vmem>>, %arg16: memref<1x8x32xbf16, #tpu.memory_space<vmem>>) attributes {dimension_semantics = [#tpu.dimension_semantics<parallel>, #tpu.dimension_semantics<arbitrary>], iteration_bounds = array<i64: 2, 1>, scalar_prefetch = 0 : i64, scratch_operands = 2 : i64, tpu.core_type = #tpu.core_type<tc>, window_params = [{transform_indices = @transform_0, window_bounds = array<i64: 1, 8, 32>}, {transform_indices = @transform_1, window_bounds = array<i64: 1, 1, 8>}, {transform_indices = @transform_2, window_bounds = array<i64: 1, 32, 96>}, {pipeline_mode = #tpu.pipeline_mode<synchronous>, transform_indices = @transform_3, window_bounds = array<i64: 1, 32, 32>}, {pipeline_mode = #tpu.pipeline_mode<synchronous>, transform_indices = @transform_4, window_bounds = array<i64: 1, 32>}, {pipeline_mode = #tpu.pipeline_mode<synchronous>, transform_indices = @transform_5, window_bounds = array<i64: 1, 32>}, {pipeline_mode = #tpu.pipeline_mode<synchronous>, transform_indices = @transform_6, window_bounds = array<i64: 1, 32>}, {pipeline_mode = #tpu.pipeline_mode<synchronous>, transform_indices = @transform_7, window_bounds = array<i64: 1, 32>}, {pipeline_mode = #tpu.pipeline_mode<synchronous>, transform_indices = @transform_8, window_bounds = array<i64: 32, 64>}, {pipeline_mode = #tpu.pipeline_mode<synchronous>, transform_indices = @transform_9, window_bounds = array<i64: 1, 64>}, {pipeline_mode = #tpu.pipeline_mode<synchronous>, transform_indices = @transform_10, window_bounds = array<i64: 64, 32>}, {pipeline_mode = #tpu.pipeline_mode<synchronous>, transform_indices = @transform_11, window_bounds = array<i64: 1, 32>}, {transform_indices = @transform_12, window_bounds = array<i64: 1, 8, 32>}]} {
    %c0_i32 = arith.constant 0 : i32
    %0 = arith.cmpi eq, %arg1, %c0_i32 : i32
    %1 = arith.extui %0 : i1 to i32
    %c0_i32_0 = arith.constant 0 : i32
    %2 = arith.cmpi ne, %1, %c0_i32_0 : i32
    scf.if %2 {
      %c0_28 = arith.constant 0 : index
      %c0_29 = arith.constant 0 : index
      %c0_30 = arith.constant 0 : index
      %99 = vector.load %arg2[%c0_28, %c0_29, %c0_30] : memref<1x8x32xf32, #tpu.memory_space<vmem>>, vector<1x8x32xf32>
      %100 = vector.shape_cast %99 : vector<1x8x32xf32> to vector<8x32xf32>
      %c0_31 = arith.constant 0 : index
      %c0_32 = arith.constant 0 : index
      %101 = vector.load %arg6[%c0_31, %c0_32] : memref<1x32xf32, #tpu.memory_space<vmem>>, vector<1x32xf32>
      %c0_33 = arith.constant 0 : index
      %c0_34 = arith.constant 0 : index
      %102 = vector.load %arg7[%c0_33, %c0_34] : memref<1x32xf32, #tpu.memory_space<vmem>>, vector<1x32xf32>
      %cst_35 = arith.constant dense<0.000000e+00> : vector<8xf32>
      %103 = vector.multi_reduction <add>, %100, %cst_35 [1] : vector<8x32xf32> to vector<8xf32>
      %104 = vector.shape_cast %103 : vector<8xf32> to vector<8x1xf32>
      %cst_36 = arith.constant 3.200000e+01 : f32
      %105 = vector.broadcast %cst_36 : f32 to vector<8x1xf32>
      %106 = arith.divf %104, %105 : vector<8x1xf32>
      %107 = vector.broadcast %106 : vector<8x1xf32> to vector<8x32xf32>
      %108 = arith.subf %100, %107 : vector<8x32xf32>
      %109 = vector.broadcast %106 : vector<8x1xf32> to vector<8x32xf32>
      %110 = arith.subf %100, %109 : vector<8x32xf32>
      %111 = arith.mulf %108, %110 : vector<8x32xf32>
      %cst_37 = arith.constant dense<0.000000e+00> : vector<8xf32>
      %112 = vector.multi_reduction <add>, %111, %cst_37 [1] : vector<8x32xf32> to vector<8xf32>
      %113 = vector.shape_cast %112 : vector<8xf32> to vector<8x1xf32>
      %cst_38 = arith.constant 0.0322580636 : f32
      %114 = vector.broadcast %cst_38 : f32 to vector<8x1xf32>
      %115 = arith.mulf %113, %114 : vector<8x1xf32>
      %116 = math.sqrt %115 : vector<8x1xf32>
      %cst_39 = arith.constant 9.99999997E-7 : f32
      %117 = vector.broadcast %cst_39 : f32 to vector<8x1xf32>
      %118 = arith.addf %116, %117 : vector<8x1xf32>
      %119 = tpu.reciprocal %118 : vector<8x1xf32> -> vector<8x1xf32>
      %120 = vector.broadcast %106 : vector<8x1xf32> to vector<8x32xf32>
      %121 = arith.subf %100, %120 : vector<8x32xf32>
      %122 = vector.broadcast %119 : vector<8x1xf32> to vector<8x32xf32>
      %123 = arith.mulf %121, %122 : vector<8x32xf32>
      %124 = vector.broadcast %101 : vector<1x32xf32> to vector<8x32xf32>
      %125 = arith.mulf %124, %123 : vector<8x32xf32>
      %126 = vector.broadcast %102 : vector<1x32xf32> to vector<8x32xf32>
      %127 = arith.addf %125, %126 : vector<8x32xf32>
      %128 = arith.truncf %127 : vector<8x32xf32> to vector<8x32xbf16>
      %c0_40 = arith.constant 0 : index
      %c0_41 = arith.constant 0 : index
      %129 = vector.load %arg15[%c0_40, %c0_41] : memref<8x32xbf16, #tpu.memory_space<vmem>>, vector<8x32xbf16>
      tpu.vector_store %arg15[%c0_40, %c0_41], %128 {strides = array<i32>} : memref<8x32xbf16, #tpu.memory_space<vmem>>, vector<8x32xbf16>,
    } else {
    }
    %c0 = arith.constant 0 : index
    %c0_1 = arith.constant 0 : index
    %3 = vector.load %arg15[%c0, %c0_1] : memref<8x32xbf16, #tpu.memory_space<vmem>>, vector<8x32xbf16>
    %c0_2 = arith.constant 0 : index
    %c0_3 = arith.constant 0 : index
    %c0_4 = arith.constant 0 : index
    %4 = vector.load %arg4[%c0_2, %c0_3, %c0_4] : memref<1x32x96xbf16, #tpu.memory_space<vmem>>, vector<1x32x96xbf16>
    %5 = vector.shape_cast %4 : vector<1x32x96xbf16> to vector<32x96xbf16>
    %cst = arith.constant dense<0.000000e+00> : vector<8x96xf32>
    %6 = tpu.matmul %3, %5, %cst {dimension_numbers = #tpu.dot_dimension_numbers<[1], [0], [0], [1], [0, 0, 1, 1], [], []>} : vector<8x32xbf16>, vector<32x96xbf16>, vector<8x96xf32> -> vector<8x96xf32>
    %7 = vector.extract_strided_slice %6 {offsets = [0, 0], sizes = [8, 32], strides = [1, 1]} : vector<8x96xf32> to vector<8x32xf32>
    %8 = arith.truncf %7 : vector<8x32xf32> to vector<8x32xbf16>
    %9 = vector.extract_strided_slice %6 {offsets = [0, 32], sizes = [8, 32], strides = [1, 1]} : vector<8x96xf32> to vector<8x32xf32>
    %10 = arith.truncf %9 : vector<8x32xf32> to vector<8x32xbf16>
    %11 = vector.extract_strided_slice %6 {offsets = [0, 64], sizes = [8, 32], strides = [1, 1]} : vector<8x96xf32> to vector<8x32xf32>
    %12 = arith.truncf %11 : vector<8x32xf32> to vector<8x32xbf16>
    %c0_5 = arith.constant 0 : index
    %c0_6 = arith.constant 0 : index
    %c0_7 = arith.constant 0 : index
    %13 = vector.load %arg3[%c0_5, %c0_6, %c0_7] : memref<1x1x8xf32, #tpu.memory_space<vmem>>, vector<1x1x8xf32>
    %14 = vector.shape_cast %13 : vector<1x1x8xf32> to vector<1x8xf32>
    %15 = vector.extract_strided_slice %8 {offsets = [0, 0], sizes = [8, 8], strides = [1, 1]} : vector<8x32xbf16> to vector<8x8xbf16>
    %16 = vector.extract_strided_slice %10 {offsets = [0, 0], sizes = [8, 8], strides = [1, 1]} : vector<8x32xbf16> to vector<8x8xbf16>
    %17 = vector.extract_strided_slice %12 {offsets = [0, 0], sizes = [8, 8], strides = [1, 1]} : vector<8x32xbf16> to vector<8x8xbf16>
    %cst_8 = arith.constant dense<0.000000e+00> : vector<8x8xf32>
    %18 = tpu.matmul %15, %16, %cst_8 {dimension_numbers = #tpu.dot_dimension_numbers<[1], [1], [0], [0], [0, 0, 1, 0], [], []>} : vector<8x8xbf16>, vector<8x8xbf16>, vector<8x8xf32> -> vector<8x8xf32>
    %19 = vector.broadcast %14 : vector<1x8xf32> to vector<8x8xf32>
    %20 = arith.addf %18, %19 : vector<8x8xf32>
    %cst_9 = arith.constant dense<0xFF800000> : vector<8xf32>
    %21 = vector.multi_reduction <maximumf>, %20, %cst_9 [1] : vector<8x8xf32> to vector<8xf32>
    %22 = vector.shape_cast %21 : vector<8xf32> to vector<8x1xf32>
    %23 = vector.broadcast %22 : vector<8x1xf32> to vector<8x8xf32>
    %24 = arith.subf %20, %23 : vector<8x8xf32>
    %25 = math.exp %24 : vector<8x8xf32>
    %cst_10 = arith.constant dense<0.000000e+00> : vector<8xf32>
    %26 = vector.multi_reduction <add>, %25, %cst_10 [1] : vector<8x8xf32> to vector<8xf32>
    %27 = vector.shape_cast %26 : vector<8xf32> to vector<8x1xf32>
    %28 = tpu.reciprocal %27 {approx = true} : vector<8x1xf32> -> vector<8x1xf32>
    %29 = arith.truncf %25 : vector<8x8xf32> to vector<8x8xbf16>
    %cst_11 = arith.constant dense<0.000000e+00> : vector<8x8xf32>
    %30 = tpu.matmul %29, %17, %cst_11 {dimension_numbers = #tpu.dot_dimension_numbers<[1], [0], [0], [1], [0, 0, 1, 1], [], []>} : vector<8x8xbf16>, vector<8x8xbf16>, vector<8x8xf32> -> vector<8x8xf32>
    %31 = vector.broadcast %28 : vector<8x1xf32> to vector<8x8xf32>
    %32 = arith.mulf %30, %31 : vector<8x8xf32>
    %33 = arith.truncf %32 : vector<8x8xf32> to vector<8x8xbf16>
    %34 = vector.extract_strided_slice %8 {offsets = [0, 8], sizes = [8, 8], strides = [1, 1]} : vector<8x32xbf16> to vector<8x8xbf16>
    %35 = vector.extract_strided_slice %10 {offsets = [0, 8], sizes = [8, 8], strides = [1, 1]} : vector<8x32xbf16> to vector<8x8xbf16>
    %36 = vector.extract_strided_slice %12 {offsets = [0, 8], sizes = [8, 8], strides = [1, 1]} : vector<8x32xbf16> to vector<8x8xbf16>
    %cst_12 = arith.constant dense<0.000000e+00> : vector<8x8xf32>
    %37 = tpu.matmul %34, %35, %cst_12 {dimension_numbers = #tpu.dot_dimension_numbers<[1], [1], [0], [0], [0, 0, 1, 0], [], []>} : vector<8x8xbf16>, vector<8x8xbf16>, vector<8x8xf32> -> vector<8x8xf32>
    %38 = vector.broadcast %14 : vector<1x8xf32> to vector<8x8xf32>
    %39 = arith.addf %37, %38 : vector<8x8xf32>
    %cst_13 = arith.constant dense<0xFF800000> : vector<8xf32>
    %40 = vector.multi_reduction <maximumf>, %39, %cst_13 [1] : vector<8x8xf32> to vector<8xf32>
    %41 = vector.shape_cast %40 : vector<8xf32> to vector<8x1xf32>
    %42 = vector.broadcast %41 : vector<8x1xf32> to vector<8x8xf32>
    %43 = arith.subf %39, %42 : vector<8x8xf32>
    %44 = math.exp %43 : vector<8x8xf32>
    %cst_14 = arith.constant dense<0.000000e+00> : vector<8xf32>
    %45 = vector.multi_reduction <add>, %44, %cst_14 [1] : vector<8x8xf32> to vector<8xf32>
    %46 = vector.shape_cast %45 : vector<8xf32> to vector<8x1xf32>
    %47 = tpu.reciprocal %46 {approx = true} : vector<8x1xf32> -> vector<8x1xf32>
    %48 = arith.truncf %44 : vector<8x8xf32> to vector<8x8xbf16>
    %cst_15 = arith.constant dense<0.000000e+00> : vector<8x8xf32>
    %49 = tpu.matmul %48, %36, %cst_15 {dimension_numbers = #tpu.dot_dimension_numbers<[1], [0], [0], [1], [0, 0, 1, 1], [], []>} : vector<8x8xbf16>, vector<8x8xbf16>, vector<8x8xf32> -> vector<8x8xf32>
    %50 = vector.broadcast %47 : vector<8x1xf32> to vector<8x8xf32>
    %51 = arith.mulf %49, %50 : vector<8x8xf32>
    %52 = arith.truncf %51 : vector<8x8xf32> to vector<8x8xbf16>
    %53 = vector.extract_strided_slice %8 {offsets = [0, 16], sizes = [8, 8], strides = [1, 1]} : vector<8x32xbf16> to vector<8x8xbf16>
    %54 = vector.extract_strided_slice %10 {offsets = [0, 16], sizes = [8, 8], strides = [1, 1]} : vector<8x32xbf16> to vector<8x8xbf16>
    %55 = vector.extract_strided_slice %12 {offsets = [0, 16], sizes = [8, 8], strides = [1, 1]} : vector<8x32xbf16> to vector<8x8xbf16>
    %cst_16 = arith.constant dense<0.000000e+00> : vector<8x8xf32>
    %56 = tpu.matmul %53, %54, %cst_16 {dimension_numbers = #tpu.dot_dimension_numbers<[1], [1], [0], [0], [0, 0, 1, 0], [], []>} : vector<8x8xbf16>, vector<8x8xbf16>, vector<8x8xf32> -> vector<8x8xf32>
    %57 = vector.broadcast %14 : vector<1x8xf32> to vector<8x8xf32>
    %58 = arith.addf %56, %57 : vector<8x8xf32>
    %cst_17 = arith.constant dense<0xFF800000> : vector<8xf32>
    %59 = vector.multi_reduction <maximumf>, %58, %cst_17 [1] : vector<8x8xf32> to vector<8xf32>
    %60 = vector.shape_cast %59 : vector<8xf32> to vector<8x1xf32>
    %61 = vector.broadcast %60 : vector<8x1xf32> to vector<8x8xf32>
    %62 = arith.subf %58, %61 : vector<8x8xf32>
    %63 = math.exp %62 : vector<8x8xf32>
    %cst_18 = arith.constant dense<0.000000e+00> : vector<8xf32>
    %64 = vector.multi_reduction <add>, %63, %cst_18 [1] : vector<8x8xf32> to vector<8xf32>
    %65 = vector.shape_cast %64 : vector<8xf32> to vector<8x1xf32>
    %66 = tpu.reciprocal %65 {approx = true} : vector<8x1xf32> -> vector<8x1xf32>
    %67 = arith.truncf %63 : vector<8x8xf32> to vector<8x8xbf16>
    %cst_19 = arith.constant dense<0.000000e+00> : vector<8x8xf32>
    %68 = tpu.matmul %67, %55, %cst_19 {dimension_numbers = #tpu.dot_dimension_numbers<[1], [0], [0], [1], [0, 0, 1, 1], [], []>} : vector<8x8xbf16>, vector<8x8xbf16>, vector<8x8xf32> -> vector<8x8xf32>
    %69 = vector.broadcast %66 : vector<8x1xf32> to vector<8x8xf32>
    %70 = arith.mulf %68, %69 : vector<8x8xf32>
    %71 = arith.truncf %70 : vector<8x8xf32> to vector<8x8xbf16>
    %72 = vector.extract_strided_slice %8 {offsets = [0, 24], sizes = [8, 8], strides = [1, 1]} : vector<8x32xbf16> to vector<8x8xbf16>
    %73 = vector.extract_strided_slice %10 {offsets = [0, 24], sizes = [8, 8], strides = [1, 1]} : vector<8x32xbf16> to vector<8x8xbf16>
    %74 = vector.extract_strided_slice %12 {offsets = [0, 24], sizes = [8, 8], strides = [1, 1]} : vector<8x32xbf16> to vector<8x8xbf16>
    %cst_20 = arith.constant dense<0.000000e+00> : vector<8x8xf32>
    %75 = tpu.matmul %72, %73, %cst_20 {dimension_numbers = #tpu.dot_dimension_numbers<[1], [1], [0], [0], [0, 0, 1, 0], [], []>} : vector<8x8xbf16>, vector<8x8xbf16>, vector<8x8xf32> -> vector<8x8xf32>
    %76 = vector.broadcast %14 : vector<1x8xf32> to vector<8x8xf32>
    %77 = arith.addf %75, %76 : vector<8x8xf32>
    %cst_21 = arith.constant dense<0xFF800000> : vector<8xf32>
    %78 = vector.multi_reduction <maximumf>, %77, %cst_21 [1] : vector<8x8xf32> to vector<8xf32>
    %79 = vector.shape_cast %78 : vector<8xf32> to vector<8x1xf32>
    %80 = vector.broadcast %79 : vector<8x1xf32> to vector<8x8xf32>
    %81 = arith.subf %77, %80 : vector<8x8xf32>
    %82 = math.exp %81 : vector<8x8xf32>
    %cst_22 = arith.constant dense<0.000000e+00> : vector<8xf32>
    %83 = vector.multi_reduction <add>, %82, %cst_22 [1] : vector<8x8xf32> to vector<8xf32>
    %84 = vector.shape_cast %83 : vector<8xf32> to vector<8x1xf32>
    %85 = tpu.reciprocal %84 {approx = true} : vector<8x1xf32> -> vector<8x1xf32>
    %86 = arith.truncf %82 : vector<8x8xf32> to vector<8x8xbf16>
    %cst_23 = arith.constant dense<0.000000e+00> : vector<8x8xf32>
    %87 = tpu.matmul %86, %74, %cst_23 {dimension_numbers = #tpu.dot_dimension_numbers<[1], [0], [0], [1], [0, 0, 1, 1], [], []>} : vector<8x8xbf16>, vector<8x8xbf16>, vector<8x8xf32> -> vector<8x8xf32>
    %88 = vector.broadcast %85 : vector<8x1xf32> to vector<8x8xf32>
    %89 = arith.mulf %87, %88 : vector<8x8xf32>
    %90 = arith.truncf %89 : vector<8x8xf32> to vector<8x8xbf16>
    %91 = tpu.concatenate %33, %52, %71, %90 in 1 : vector<8x8xbf16>, vector<8x8xbf16>, vector<8x8xbf16>, vector<8x8xbf16> -> vector<8x32xbf16>
    %92 = arith.index_cast %arg1 : i32 to index
    %c0_24 = arith.constant 0 : index
    %c0_25 = arith.constant 0 : index
    %93 = vector.load %arg16[%92, %c0_24, %c0_25] : memref<1x8x32xbf16, #tpu.memory_space<vmem>>, vector<1x8x32xbf16>
    %94 = vector.shape_cast %93 : vector<1x8x32xbf16> to vector<8x32xbf16>
    %95 = vector.shape_cast %91 : vector<8x32xbf16> to vector<1x8x32xbf16>
    tpu.vector_store %arg16[%92, %c0_24, %c0_25], %95 {strides = array<i32>} : memref<1x8x32xbf16, #tpu.memory_space<vmem>>, vector<1x8x32xbf16>,
    %c0_i32_26 = arith.constant 0 : i32
    %96 = arith.cmpi eq, %arg1, %c0_i32_26 : i32
    %97 = arith.extui %96 : i1 to i32
    %c0_i32_27 = arith.constant 0 : i32
    %98 = arith.cmpi ne, %97, %c0_i32_27 : i32
    scf.if %98 {
      %c0_28 = arith.constant 0 : index
      %c0_29 = arith.constant 0 : index
      %c0_30 = arith.constant 0 : index
      %99 = vector.load %arg2[%c0_28, %c0_29, %c0_30] : memref<1x8x32xf32, #tpu.memory_space<vmem>>, vector<1x8x32xf32>
      %100 = vector.shape_cast %99 : vector<1x8x32xf32> to vector<8x32xf32>
      %c0_31 = arith.constant 0 : index
      %c0_32 = arith.constant 0 : index
      %c0_33 = arith.constant 0 : index
      %101 = vector.load %arg16[%c0_31, %c0_32, %c0_33] : memref<1x8x32xbf16, #tpu.memory_space<vmem>>, vector<1x8x32xbf16>
      %102 = vector.shape_cast %101 : vector<1x8x32xbf16> to vector<8x32xbf16>
      %c0_34 = arith.constant 0 : index
      %c0_35 = arith.constant 0 : index
      %c0_36 = arith.constant 0 : index
      %103 = vector.load %arg5[%c0_34, %c0_35, %c0_36] : memref<1x32x32xbf16, #tpu.memory_space<vmem>>, vector<1x32x32xbf16>
      %104 = vector.shape_cast %103 : vector<1x32x32xbf16> to vector<32x32xbf16>
      %cst_37 = arith.constant dense<0.000000e+00> : vector<8x32xf32>
      %105 = tpu.matmul %102, %104, %cst_37 {dimension_numbers = #tpu.dot_dimension_numbers<[1], [0], [0], [1], [0, 0, 1, 1], [], []>} : vector<8x32xbf16>, vector<32x32xbf16>, vector<8x32xf32> -> vector<8x32xf32>
      %106 = arith.addf %100, %105 : vector<8x32xf32>
      %c0_38 = arith.constant 0 : index
      %c0_39 = arith.constant 0 : index
      %107 = vector.load %arg8[%c0_38, %c0_39] : memref<1x32xf32, #tpu.memory_space<vmem>>, vector<1x32xf32>
      %c0_40 = arith.constant 0 : index
      %c0_41 = arith.constant 0 : index
      %108 = vector.load %arg9[%c0_40, %c0_41] : memref<1x32xf32, #tpu.memory_space<vmem>>, vector<1x32xf32>
      %cst_42 = arith.constant dense<0.000000e+00> : vector<8xf32>
      %109 = vector.multi_reduction <add>, %106, %cst_42 [1] : vector<8x32xf32> to vector<8xf32>
      %110 = vector.shape_cast %109 : vector<8xf32> to vector<8x1xf32>
      %cst_43 = arith.constant 3.200000e+01 : f32
      %111 = vector.broadcast %cst_43 : f32 to vector<8x1xf32>
      %112 = arith.divf %110, %111 : vector<8x1xf32>
      %113 = vector.broadcast %112 : vector<8x1xf32> to vector<8x32xf32>
      %114 = arith.subf %106, %113 : vector<8x32xf32>
      %115 = vector.broadcast %112 : vector<8x1xf32> to vector<8x32xf32>
      %116 = arith.subf %106, %115 : vector<8x32xf32>
      %117 = arith.mulf %114, %116 : vector<8x32xf32>
      %cst_44 = arith.constant dense<0.000000e+00> : vector<8xf32>
      %118 = vector.multi_reduction <add>, %117, %cst_44 [1] : vector<8x32xf32> to vector<8xf32>
      %119 = vector.shape_cast %118 : vector<8xf32> to vector<8x1xf32>
      %cst_45 = arith.constant 0.0322580636 : f32
      %120 = vector.broadcast %cst_45 : f32 to vector<8x1xf32>
      %121 = arith.mulf %119, %120 : vector<8x1xf32>
      %122 = math.sqrt %121 : vector<8x1xf32>
      %cst_46 = arith.constant 9.99999997E-7 : f32
      %123 = vector.broadcast %cst_46 : f32 to vector<8x1xf32>
      %124 = arith.addf %122, %123 : vector<8x1xf32>
      %125 = tpu.reciprocal %124 : vector<8x1xf32> -> vector<8x1xf32>
      %126 = vector.broadcast %112 : vector<8x1xf32> to vector<8x32xf32>
      %127 = arith.subf %106, %126 : vector<8x32xf32>
      %128 = vector.broadcast %125 : vector<8x1xf32> to vector<8x32xf32>
      %129 = arith.mulf %127, %128 : vector<8x32xf32>
      %130 = vector.broadcast %107 : vector<1x32xf32> to vector<8x32xf32>
      %131 = arith.mulf %130, %129 : vector<8x32xf32>
      %132 = vector.broadcast %108 : vector<1x32xf32> to vector<8x32xf32>
      %133 = arith.addf %131, %132 : vector<8x32xf32>
      %134 = arith.truncf %133 : vector<8x32xf32> to vector<8x32xbf16>
      %c0_47 = arith.constant 0 : index
      %c0_48 = arith.constant 0 : index
      %135 = vector.load %arg10[%c0_47, %c0_48] : memref<32x64xbf16, #tpu.memory_space<vmem>>, vector<32x64xbf16>
      %cst_49 = arith.constant dense<0.000000e+00> : vector<8x64xf32>
      %136 = tpu.matmul %134, %135, %cst_49 {dimension_numbers = #tpu.dot_dimension_numbers<[1], [0], [0], [1], [0, 0, 1, 1], [], []>} : vector<8x32xbf16>, vector<32x64xbf16>, vector<8x64xf32> -> vector<8x64xf32>
      %c0_50 = arith.constant 0 : index
      %c0_51 = arith.constant 0 : index
      %137 = vector.load %arg11[%c0_50, %c0_51] : memref<1x64xf32, #tpu.memory_space<vmem>>, vector<1x64xf32>
      %138 = vector.broadcast %137 : vector<1x64xf32> to vector<8x64xf32>
      %139 = arith.addf %136, %138 : vector<8x64xf32>
      %cst_52 = arith.constant 0.000000e+00 : f32
      %140 = vector.broadcast %cst_52 : f32 to vector<8x64xf32>
      %141 = arith.maximumf %139, %140 : vector<8x64xf32>
      %142 = arith.truncf %141 : vector<8x64xf32> to vector<8x64xbf16>
      %c0_53 = arith.constant 0 : index
      %c0_54 = arith.constant 0 : index
      %143 = vector.load %arg12[%c0_53, %c0_54] : memref<64x32xbf16, #tpu.memory_space<vmem>>, vector<64x32xbf16>
      %cst_55 = arith.constant dense<0.000000e+00> : vector<8x32xf32>
      %144 = tpu.matmul %142, %143, %cst_55 {dimension_numbers = #tpu.dot_dimension_numbers<[1], [0], [0], [1], [0, 0, 1, 1], [], []>} : vector<8x64xbf16>, vector<64x32xbf16>, vector<8x32xf32> -> vector<8x32xf32>
      %c0_56 = arith.constant 0 : index
      %c0_57 = arith.constant 0 : index
      %145 = vector.load %arg13[%c0_56, %c0_57] : memref<1x32xf32, #tpu.memory_space<vmem>>, vector<1x32xf32>
      %146 = vector.broadcast %145 : vector<1x32xf32> to vector<8x32xf32>
      %147 = arith.addf %144, %146 : vector<8x32xf32>
      %148 = arith.addf %106, %147 : vector<8x32xf32>
      %c0_58 = arith.constant 0 : index
      %c0_59 = arith.constant 0 : index
      %c0_60 = arith.constant 0 : index
      %149 = vector.load %arg14[%c0_58, %c0_59, %c0_60] : memref<1x8x32xf32, #tpu.memory_space<vmem>>, vector<1x8x32xf32>
      %150 = vector.shape_cast %149 : vector<1x8x32xf32> to vector<8x32xf32>
      %151 = vector.shape_cast %148 : vector<8x32xf32> to vector<1x8x32xf32>
      tpu.vector_store %arg14[%c0_58, %c0_59, %c0_60], %151 {strides = array<i32>} : memref<1x8x32xf32, #tpu.memory_space<vmem>>, vector<1x8x32xf32>,
    } else {
    }
    return
  }
  func.func @transform_0(%arg0: i32, %arg1: i32) -> (i32, i32, i32) {
    %c0_i32 = arith.constant 0 : i32
    %c0_i32_0 = arith.constant 0 : i32
    %c0_i32_1 = arith.constant 0 : i32
    return %arg0, %c0_i32, %c0_i32_0 : i32, i32, i32
  }
  func.func @transform_1(%arg0: i32, %arg1: i32) -> (i32, i32, i32) {
    %c0_i32 = arith.constant 0 : i32
    %c0_i32_0 = arith.constant 0 : i32
    %c0_i32_1 = arith.constant 0 : i32
    return %arg0, %c0_i32, %c0_i32_0 : i32, i32, i32
  }
  func.func @transform_2(%arg0: i32, %arg1: i32) -> (i32, i32, i32) {
    %c0_i32 = arith.constant 0 : i32
    %c0_i32_0 = arith.constant 0 : i32
    %c0_i32_1 = arith.constant 0 : i32
    return %arg1, %c0_i32, %c0_i32_0 : i32, i32, i32
  }
  func.func @transform_3(%arg0: i32, %arg1: i32) -> (i32, i32, i32) {
    %c0_i32 = arith.constant 0 : i32
    %c0_i32_0 = arith.constant 0 : i32
    %c0_i32_1 = arith.constant 0 : i32
    %c0_i32_2 = arith.constant 0 : i32
    return %c0_i32, %c0_i32_0, %c0_i32_1 : i32, i32, i32
  }
  func.func @transform_4(%arg0: i32, %arg1: i32) -> (i32, i32) {
    %c0_i32 = arith.constant 0 : i32
    %c0_i32_0 = arith.constant 0 : i32
    %c0_i32_1 = arith.constant 0 : i32
    return %c0_i32, %c0_i32_0 : i32, i32
  }
  func.func @transform_5(%arg0: i32, %arg1: i32) -> (i32, i32) {
    %c0_i32 = arith.constant 0 : i32
    %c0_i32_0 = arith.constant 0 : i32
    %c0_i32_1 = arith.constant 0 : i32
    return %c0_i32, %c0_i32_0 : i32, i32
  }
  func.func @transform_6(%arg0: i32, %arg1: i32) -> (i32, i32) {
    %c0_i32 = arith.constant 0 : i32
    %c0_i32_0 = arith.constant 0 : i32
    %c0_i32_1 = arith.constant 0 : i32
    return %c0_i32, %c0_i32_0 : i32, i32
  }
  func.func @transform_7(%arg0: i32, %arg1: i32) -> (i32, i32) {
    %c0_i32 = arith.constant 0 : i32
    %c0_i32_0 = arith.constant 0 : i32
    %c0_i32_1 = arith.constant 0 : i32
    return %c0_i32, %c0_i32_0 : i32, i32
  }
  func.func @transform_8(%arg0: i32, %arg1: i32) -> (i32, i32) {
    %c0_i32 = arith.constant 0 : i32
    %c0_i32_0 = arith.constant 0 : i32
    %c0_i32_1 = arith.constant 0 : i32
    return %c0_i32, %c0_i32_0 : i32, i32
  }
  func.func @transform_9(%arg0: i32, %arg1: i32) -> (i32, i32) {
    %c0_i32 = arith.constant 0 : i32
    %c0_i32_0 = arith.constant 0 : i32
    %c0_i32_1 = arith.constant 0 : i32
    return %c0_i32, %c0_i32_0 : i32, i32
  }
  func.func @transform_10(%arg0: i32, %arg1: i32) -> (i32, i32) {
    %c0_i32 = arith.constant 0 : i32
    %c0_i32_0 = arith.constant 0 : i32
    %c0_i32_1 = arith.constant 0 : i32
    return %c0_i32, %c0_i32_0 : i32, i32
  }
  func.func @transform_11(%arg0: i32, %arg1: i32) -> (i32, i32) {
    %c0_i32 = arith.constant 0 : i32
    %c0_i32_0 = arith.constant 0 : i32
    %c0_i32_1 = arith.constant 0 : i32
    return %c0_i32, %c0_i32_0 : i32, i32
  }
  func.func @transform_12(%arg0: i32, %arg1: i32) -> (i32, i32, i32) {
    %c0_i32 = arith.constant 0 : i32
    %c0_i32_0 = arith.constant 0 : i32
    %c0_i32_1 = arith.constant 0 : i32
    return %arg0, %c0_i32, %c0_i32_0 : i32, i32, i32
  }
}

</mosaic_0001>

<llo_original>
// kernel: tpu_custom_call.1
$region0: #{tpu_custom_call.1}
  #allocation0 [shape = 'u32[]', space=smem, size = 0x4, offset = 0x4, fixed_abs, tag = 'smem constant byte address 0x4 - core index']
  #allocation1 [shape = 'u32[144,128]{1,0:T(1,128)}', space=vmem, size = 0x12000, scoped, tag = 'internal scratch']
  #allocation2 [shape = 'bf16[8,32]{1,0:T(8,128)(2,1)}', space=vmem, size = 0x800, scoped, tag = 'scratch operand']
  #allocation3 [shape = 'bf16[1,8,32]{2,1,0:T(8,128)(2,1)}', space=vmem, size = 0x800, scoped, tag = 'scratch operand']
  %s0 = inlined_call_operand.vmem [shape: f32[2,8,32], index: 0, kind: input, shape index: {}]
  %s1 = inlined_call_operand.vmem [shape: f32[2,1,8], index: 1, kind: input, shape index: {}]
  %s2 = inlined_call_operand.vmem [shape: bf16[1,32,96], index: 2, kind: input, shape index: {}]
  %s3 = inlined_call_operand.vmem [shape: bf16[1,32,32], index: 3, kind: input, shape index: {}]
  %s4 = inlined_call_operand.vmem [shape: f32[1,32], index: 4, kind: input, shape index: {}]
  %s5 = inlined_call_operand.vmem [shape: f32[1,32], index: 5, kind: input, shape index: {}]
  %s6 = inlined_call_operand.vmem [shape: f32[1,32], index: 6, kind: input, shape index: {}]
  %s7 = inlined_call_operand.vmem [shape: f32[1,32], index: 7, kind: input, shape index: {}]
  %s8 = inlined_call_operand.hbm [shape: bf16[32,64], index: 8, kind: input, shape index: {}]
  %s9 = inlined_call_operand.vmem [shape: f32[1,64], index: 9, kind: input, shape index: {}]
  %s10 = inlined_call_operand.vmem [shape: bf16[64,32], index: 10, kind: input, shape index: {}]
  %s11 = inlined_call_operand.vmem [shape: f32[1,32], index: 11, kind: input, shape index: {}]
  %s12 = inlined_call_operand.hbm [shape: f32[2,8,32], index: 12, kind: output, shape index: {}]
  %s13 = sld [smem:[#allocation0]]
  $region93: #{tpu_custom_call.1} parent=0
    _
  %s15 = ssub.s32 1, %s13
  %s16 = scalar_select 0, %s15, %s13
  $region1: #{tpu_custom_call.1} parent=0
    #allocation4 [shape = 'u8[8192]{0}', space=vmem, size = 0x2000, scoped, tag = 'input window, operand 8, single buffered']
    #allocation5 [shape = 's32[2]{0}', space=sflag, size = 0x8, scoped, tag = 'scoped memory for tpu_custom_call.1']
    #allocation6 [shape = 's32[2]{0}', space=sflag, size = 0x8, scoped, tag = 'scoped memory for tpu_custom_call.1']
    #allocation7 [shape = 'u8[8192]{0}', space=vmem, size = 0x2000, scoped, tag = 'output window, operand 0']
    %17 = vsyncpa [#allocation5], 0
    %18 = vsyncpa [#allocation6], 0
    %s19 = scalar_lea.sflag [#allocation6], 1
    %20 = vsyncpa %s19, 0
    loop: start=0, step=1, limit=4
    $region2: #{tpu_custom_call.1} parent=1 // loop_pre_header
      _
    $region3: #{tpu_custom_call.1} parent=1 // loop_header
      %s22 = sphi 0, %s26
      %p23 = scmp.ge.s32.totalorder %s22, 4
      %s29 = sphi 0, %s41
      %s30 = sphi 0, %s37
      %s31 = sphi 0, %s29
      %s32 = sphi 0, %s30
      %s33 = sphi 0, %s31
      %s34 = sphi 0, %s32
      %s44 = sphi 0, %s46
      %s47 = sphi 0, %s44
      %s48 = sphi 0, %s47
      %s64 = sphi 0, %s48
      %s70 = sphi 0, %s72
      %s73 = sphi 0, %s70
      %s74 = sphi 0, %s73
      %s90 = sphi 0, %s74
      %s96 = sphi 0, %s98
      %s99 = sphi 0, %s96
      %s100 = sphi 0, %s99
      %s116 = sphi 0, %s100
      %s120 = sphi 0, %s120
      %s122 = sphi 0, %s120
      %s123 = sphi 0, %s122
      %s137 = sphi 0, %s123
      %s141 = sphi 0, %s141
      %s143 = sphi 0, %s141
      %s144 = sphi 0, %s143
      %s158 = sphi 0, %s144
      %s162 = sphi 0, %s162
      %s164 = sphi 0, %s162
      %s165 = sphi 0, %s164
      %s179 = sphi 0, %s165
      %s183 = sphi 0, %s183
      %s185 = sphi 0, %s183
      %s186 = sphi 0, %s185
      %s200 = sphi 0, %s186
      %s204 = sphi 0, %s204
      %s206 = sphi 0, %s204
      %s207 = sphi 0, %s206
      %s221 = sphi 0, %s207
      %s225 = sphi 0, %s225
      %s227 = sphi 0, %s225
      %s228 = sphi 0, %s227
      %s242 = sphi 0, %s228
      %s246 = sphi 0, %s246
      %s248 = sphi 0, %s246
      %s249 = sphi 0, %s248
      %s263 = sphi 0, %s249
      %s267 = sphi 0, %s267
      %s269 = sphi 0, %s267
      %s270 = sphi 0, %s269
      %s284 = sphi 0, %s270
      %s288 = sphi 0, %s288
      %s290 = sphi 0, %s288
      %s291 = sphi 0, %s290
      %s305 = sphi 0, %s291
      %s311 = sphi 0, %s313
      %s314 = sphi 0, %s311
      %s315 = sphi 0, %s314
      %s331 = sphi 0, %s315
    $region4: #{tpu_custom_call.1} parent=1 // loop_header_branch
      %25 = sbr.rel (%p23) target = $region8
    $region5: #{tpu_custom_call.1} parent=1 // loop_body
      %s27 = ssub.s32 %s22, 1
      %s28 = ssub.s32 %s22, 2
      %s35 = sadd.s32 1, %s30
      %p36 = scmp.ge.s32.totalorder %s35, 1
      %s37 = scalar_select %p36, 0, %s35
      %s38 = sadd.s32 1, %s29
      %s39 = scalar_select %p36, %s38, %s29
      %p40 = scmp.ge.s32.totalorder %s39, 2
      %s41 = scalar_select %p40, 0, %s39
      %s42 = ssub.s32 %s29, %s41
      %p43 = scmp.eq.s32.totalorder %s42, 0
      %s45 = sadd.s32 %s44, 1
      %s46 = scalar_select %p43, %s44, %s45
      %p49 = pneg %p43
      %p50 = scmp.eq.s32.totalorder %s22, 1
      %p51 = por %p49, %p50
      %p52 = scmp.ne.s32.totalorder %s44, %s47
      %p53 = scmp.eq.s32.totalorder %s22, 0
      %p54 = por %p52, %p53
      %p55 = scmp.ne.s32.totalorder %s44, %s47
      %p56 = scmp.eq.s32.totalorder %s27, 1
      %p57 = por %p55, %p56
      %p58 = scmp.ne.s32.totalorder %s47, %s48
      %p59 = scmp.eq.s32.totalorder %s27, 0
      %p60 = por %p58, %p59
      %p61 = scmp.ne.s32.totalorder %s47, %s48
      %p62 = scmp.eq.s32.totalorder %s28, 1
      %p63 = por %p61, %p62
      %p65 = scmp.ne.s32.totalorder %s48, %s64
      %p66 = scmp.eq.s32.totalorder %s28, 0
      %p67 = por %p65, %p66
      %s68 = ssub.s32 %s29, %s41
      %p69 = scmp.eq.s32.totalorder %s68, 0
      %s71 = sadd.s32 %s70, 1
      %s72 = scalar_select %p69, %s70, %s71
      %p75 = pneg %p69
      %p76 = scmp.eq.s32.totalorder %s22, 1
      %p77 = por %p75, %p76
      %p78 = scmp.ne.s32.totalorder %s70, %s73
      %p79 = scmp.eq.s32.totalorder %s22, 0
      %p80 = por %p78, %p79
      %p81 = scmp.ne.s32.totalorder %s70, %s73
      %p82 = scmp.eq.s32.totalorder %s27, 1
      %p83 = por %p81, %p82
      %p84 = scmp.ne.s32.totalorder %s73, %s74
      %p85 = scmp.eq.s32.totalorder %s27, 0
      %p86 = por %p84, %p85
      %p87 = scmp.ne.s32.totalorder %s73, %s74
      %p88 = scmp.eq.s32.totalorder %s28, 1
      %p89 = por %p87, %p88
      %p91 = scmp.ne.s32.totalorder %s74, %s90
      %p92 = scmp.eq.s32.totalorder %s28, 0
      %p93 = por %p91, %p92
      %s94 = ssub.s32 %s30, %s37
      %p95 = scmp.eq.s32.totalorder %s94, 0
      %s97 = sadd.s32 %s96, 1
      %s98 = scalar_select %p95, %s96, %s97
      %p101 = pneg %p95
      %p102 = scmp.eq.s32.totalorder %s22, 1
      %p103 = por %p101, %p102
      %p104 = scmp.ne.s32.totalorder %s96, %s99
      %p105 = scmp.eq.s32.totalorder %s22, 0
      %p106 = por %p104, %p105
      %p107 = scmp.ne.s32.totalorder %s96, %s99
      %p108 = scmp.eq.s32.totalorder %s27, 1
      %p109 = por %p107, %p108
      %p110 = scmp.ne.s32.totalorder %s99, %s100
      %p111 = scmp.eq.s32.totalorder %s27, 0
      %p112 = por %p110, %p111
      %p113 = scmp.ne.s32.totalorder %s99, %s100
      %p114 = scmp.eq.s32.totalorder %s28, 1
      %p115 = por %p113, %p114
      %p117 = scmp.ne.s32.totalorder %s100, %s116
      %p118 = scmp.eq.s32.totalorder %s28, 0
      %p119 = por %p117, %p118
      %s121 = sadd.s32 %s120, 1
      %p124 = scmp.eq.s32.totalorder %s22, 1
      %p125 = scmp.ne.s32.totalorder %s120, %s122
      %p126 = scmp.eq.s32.totalorder %s22, 0
      %p127 = por %p125, %p126
      %p128 = scmp.ne.s32.totalorder %s120, %s122
      %p129 = scmp.eq.s32.totalorder %s27, 1
      %p130 = por %p128, %p129
      %p131 = scmp.ne.s32.totalorder %s122, %s123
      %p132 = scmp.eq.s32.totalorder %s27, 0
      %p133 = por %p131, %p132
      %p134 = scmp.ne.s32.totalorder %s122, %s123
      %p135 = scmp.eq.s32.totalorder %s28, 1
      %p136 = por %p134, %p135
      %p138 = scmp.ne.s32.totalorder %s123, %s137
      %p139 = scmp.eq.s32.totalorder %s28, 0
      %p140 = por %p138, %p139
      %s142 = sadd.s32 %s141, 1
      %p145 = scmp.eq.s32.totalorder %s22, 1
      %p146 = scmp.ne.s32.totalorder %s141, %s143
      %p147 = scmp.eq.s32.totalorder %s22, 0
      %p148 = por %p146, %p147
      %p149 = scmp.ne.s32.totalorder %s141, %s143
      %p150 = scmp.eq.s32.totalorder %s27, 1
      %p151 = por %p149, %p150
      %p152 = scmp.ne.s32.totalorder %s143, %s144
      %p153 = scmp.eq.s32.totalorder %s27, 0
      %p154 = por %p152, %p153
      %p155 = scmp.ne.s32.totalorder %s143, %s144
      %p156 = scmp.eq.s32.totalorder %s28, 1
      %p157 = por %p155, %p156
      %p159 = scmp.ne.s32.totalorder %s144, %s158
      %p160 = scmp.eq.s32.totalorder %s28, 0
      %p161 = por %p159, %p160
      %s163 = sadd.s32 %s162, 1
      %p166 = scmp.eq.s32.totalorder %s22, 1
      %p167 = scmp.ne.s32.totalorder %s162, %s164
      %p168 = scmp.eq.s32.totalorder %s22, 0
      %p169 = por %p167, %p168
      %p170 = scmp.ne.s32.totalorder %s162, %s164
      %p171 = scmp.eq.s32.totalorder %s27, 1
      %p172 = por %p170, %p171
      %p173 = scmp.ne.s32.totalorder %s164, %s165
      %p174 = scmp.eq.s32.totalorder %s27, 0
      %p175 = por %p173, %p174
      %p176 = scmp.ne.s32.totalorder %s164, %s165
      %p177 = scmp.eq.s32.totalorder %s28, 1
      %p178 = por %p176, %p177
      %p180 = scmp.ne.s32.totalorder %s165, %s179
      %p181 = scmp.eq.s32.totalorder %s28, 0
      %p182 = por %p180, %p181
      %s184 = sadd.s32 %s183, 1
      %p187 = scmp.eq.s32.totalorder %s22, 1
      %p188 = scmp.ne.s32.totalorder %s183, %s185
      %p189 = scmp.eq.s32.totalorder %s22, 0
      %p190 = por %p188, %p189
      %p191 = scmp.ne.s32.totalorder %s183, %s185
      %p192 = scmp.eq.s32.totalorder %s27, 1
      %p193 = por %p191, %p192
      %p194 = scmp.ne.s32.totalorder %s185, %s186
      %p195 = scmp.eq.s32.totalorder %s27, 0
      %p196 = por %p194, %p195
      %p197 = scmp.ne.s32.totalorder %s185, %s186
      %p198 = scmp.eq.s32.totalorder %s28, 1
      %p199 = por %p197, %p198
      %p201 = scmp.ne.s32.totalorder %s186, %s200
      %p202 = scmp.eq.s32.totalorder %s28, 0
      %p203 = por %p201, %p202
      %s205 = sadd.s32 %s204, 1
      %p208 = scmp.eq.s32.totalorder %s22, 1
      %p209 = scmp.ne.s32.totalorder %s204, %s206
      %p210 = scmp.eq.s32.totalorder %s22, 0
      %p211 = por %p209, %p210
      %p212 = scmp.ne.s32.totalorder %s204, %s206
      %p213 = scmp.eq.s32.totalorder %s27, 1
      %p214 = por %p212, %p213
      %p215 = scmp.ne.s32.totalorder %s206, %s207
      %p216 = scmp.eq.s32.totalorder %s27, 0
      %p217 = por %p215, %p216
      %p218 = scmp.ne.s32.totalorder %s206, %s207
      %p219 = scmp.eq.s32.totalorder %s28, 1
      %p220 = por %p218, %p219
      %p222 = scmp.ne.s32.totalorder %s207, %s221
      %p223 = scmp.eq.s32.totalorder %s28, 0
      %p224 = por %p222, %p223
      %s226 = sadd.s32 %s225, 1
      %p229 = scmp.eq.s32.totalorder %s22, 1
      %p230 = scmp.ne.s32.totalorder %s225, %s227
      %p231 = scmp.eq.s32.totalorder %s22, 0
      %p232 = por %p230, %p231
      %p233 = scmp.ne.s32.totalorder %s225, %s227
      %p234 = scmp.eq.s32.totalorder %s27, 1
      %p235 = por %p233, %p234
      %p236 = scmp.ne.s32.totalorder %s227, %s228
      %p237 = scmp.eq.s32.totalorder %s27, 0
      %p238 = por %p236, %p237
      %p239 = scmp.ne.s32.totalorder %s227, %s228
      %p240 = scmp.eq.s32.totalorder %s28, 1
      %p241 = por %p239, %p240
      %p243 = scmp.ne.s32.totalorder %s228, %s242
      %p244 = scmp.eq.s32.totalorder %s28, 0
      %p245 = por %p243, %p244
      %s247 = sadd.s32 %s246, 1
      %p250 = scmp.eq.s32.totalorder %s22, 1
      %p251 = scmp.ne.s32.totalorder %s246, %s248
      %p252 = scmp.eq.s32.totalorder %s22, 0
      %p253 = por %p251, %p252
      %p254 = scmp.ne.s32.totalorder %s246, %s248
      %p255 = scmp.eq.s32.totalorder %s27, 1
      %p256 = por %p254, %p255
      %p257 = scmp.ne.s32.totalorder %s248, %s249
      %p258 = scmp.eq.s32.totalorder %s27, 0
      %p259 = por %p257, %p258
      %p260 = scmp.ne.s32.totalorder %s248, %s249
      %p261 = scmp.eq.s32.totalorder %s28, 1
      %p262 = por %p260, %p261
      %p264 = scmp.ne.s32.totalorder %s249, %s263
      %p265 = scmp.eq.s32.totalorder %s28, 0
      %p266 = por %p264, %p265
      %s268 = sadd.s32 %s267, 1
      %p271 = scmp.eq.s32.totalorder %s22, 1
      %p272 = scmp.ne.s32.totalorder %s267, %s269
      %p273 = scmp.eq.s32.totalorder %s22, 0
      %p274 = por %p272, %p273
      %p275 = scmp.ne.s32.totalorder %s267, %s269
      %p276 = scmp.eq.s32.totalorder %s27, 1
      %p277 = por %p275, %p276
      %p278 = scmp.ne.s32.totalorder %s269, %s270
      %p279 = scmp.eq.s32.totalorder %s27, 0
      %p280 = por %p278, %p279
      %p281 = scmp.ne.s32.totalorder %s269, %s270
      %p282 = scmp.eq.s32.totalorder %s28, 1
      %p283 = por %p281, %p282
      %p285 = scmp.ne.s32.totalorder %s270, %s284
      %p286 = scmp.eq.s32.totalorder %s28, 0
      %p287 = por %p285, %p286
      %s289 = sadd.s32 %s288, 1
      %p292 = scmp.eq.s32.totalorder %s22, 1
      %p293 = scmp.ne.s32.totalorder %s288, %s290
      %p294 = scmp.eq.s32.totalorder %s22, 0
      %p295 = por %p293, %p294
      %p296 = scmp.ne.s32.totalorder %s288, %s290
      %p297 = scmp.eq.s32.totalorder %s27, 1
      %p298 = por %p296, %p297
      %p299 = scmp.ne.s32.totalorder %s290, %s291
      %p300 = scmp.eq.s32.totalorder %s27, 0
      %p301 = por %p299, %p300
      %p302 = scmp.ne.s32.totalorder %s290, %s291
      %p303 = scmp.eq.s32.totalorder %s28, 1
      %p304 = por %p302, %p303
      %p306 = scmp.ne.s32.totalorder %s291, %s305
      %p307 = scmp.eq.s32.totalorder %s28, 0
      %p308 = por %p306, %p307
      %s309 = ssub.s32 %s29, %s41
      %p310 = scmp.eq.s32.totalorder %s309, 0
      %s312 = sadd.s32 %s311, 1
      %s313 = scalar_select %p310, %s311, %s312
      %p316 = pneg %p310
      %p317 = scmp.eq.s32.totalorder %s22, 1
      %p318 = por %p316, %p317
      %p319 = scmp.ne.s32.totalorder %s311, %s314
      %p320 = scmp.eq.s32.totalorder %s22, 0
      %p321 = por %p319, %p320
      %p322 = scmp.ne.s32.totalorder %s311, %s314
      %p323 = scmp.eq.s32.totalorder %s27, 1
      %p324 = por %p322, %p323
      %p325 = scmp.ne.s32.totalorder %s314, %s315
      %p326 = scmp.eq.s32.totalorder %s27, 0
      %p327 = por %p325, %p326
      %p328 = scmp.ne.s32.totalorder %s314, %s315
      %p329 = scmp.eq.s32.totalorder %s28, 1
      %p330 = por %p328, %p329
      %p332 = scmp.ne.s32.totalorder %s315, %s331
      %p333 = scmp.eq.s32.totalorder %s28, 0
      %p334 = por %p332, %p333
      %p335 = scmp.le.s32.totalorder 1, %s22
      %p336 = scmp.lt.s32.totalorder %s22, 3
      %p337 = pnand %p335, %p336
      %p338 = pneg %p337
      // Predicated region
      $region9: #{tpu_custom_call.1} parent=5 // pred_check
        _
      $region10: #{tpu_custom_call.1} parent=5 // pred_check_branch
        %340 = sbr.rel (%p337) target = $region12
      $region11: #{tpu_custom_call.1} parent=5 // pred_region
        %s341 = ssub.s32 %s22, 1
        // Predicated region
        $region13: #{tpu_custom_call.1} parent=11 // pred_check
          %p342 = pneg %p112
        $region14: #{tpu_custom_call.1} parent=11 // pred_check_branch
          %344 = sbr.rel (%p342) target = $region16
        $region15: #{tpu_custom_call.1} parent=11 // pred_region
          %p345 = scmp.lt.s32.totalorder %s32, 0
          %s346 = scalar_select %p345, %s32, 0
          %s347 = smul.addr %s346, 4
          %s348 = smul.addr %s347, 4
          %s349 = scalar_lea.vmem %s2, %s348
        $region16: #{tpu_custom_call.1} parent=11 // pred_fallthru
          _
        // Predicated region
        $region17: #{tpu_custom_call.1} parent=11 // pred_check
          %p350 = pneg %p133
        $region18: #{tpu_custom_call.1} parent=11 // pred_check_branch
          %352 = sbr.rel (%p350) target = $region20
        $region19: #{tpu_custom_call.1} parent=11 // pred_region
          _
        $region20: #{tpu_custom_call.1} parent=11 // pred_fallthru
          _
        // Predicated region
        $region21: #{tpu_custom_call.1} parent=11 // pred_check
          %p353 = pneg %p154
        $region22: #{tpu_custom_call.1} parent=11 // pred_check_branch
          %355 = sbr.rel (%p353) target = $region24
        $region23: #{tpu_custom_call.1} parent=11 // pred_region
          _
        $region24: #{tpu_custom_call.1} parent=11 // pred_fallthru
          _
        // Predicated region
        $region25: #{tpu_custom_call.1} parent=11 // pred_check
          %p356 = pneg %p175
        $region26: #{tpu_custom_call.1} parent=11 // pred_check_branch
          %358 = sbr.rel (%p356) target = $region28
        $region27: #{tpu_custom_call.1} parent=11 // pred_region
          _
        $region28: #{tpu_custom_call.1} parent=11 // pred_fallthru
          _
        // Predicated region
        $region29: #{tpu_custom_call.1} parent=11 // pred_check
          %p359 = pneg %p196
        $region30: #{tpu_custom_call.1} parent=11 // pred_check_branch
          %361 = sbr.rel (%p359) target = $region32
        $region31: #{tpu_custom_call.1} parent=11 // pred_region
          _
        $region32: #{tpu_custom_call.1} parent=11 // pred_fallthru
          _
        // Predicated region
        $region33: #{tpu_custom_call.1} parent=11 // pred_check
          %p362 = pneg %p217
        $region34: #{tpu_custom_call.1} parent=11 // pred_check_branch
          %364 = sbr.rel (%p362) target = $region36
        $region35: #{tpu_custom_call.1} parent=11 // pred_region
          _
        $region36: #{tpu_custom_call.1} parent=11 // pred_fallthru
          _
        // Predicated region
        $region37: #{tpu_custom_call.1} parent=11 // pred_check
          %p365 = pneg %p238
        $region38: #{tpu_custom_call.1} parent=11 // pred_check_branch
          %367 = sbr.rel (%p365) target = $region40
        $region39: #{tpu_custom_call.1} parent=11 // pred_region
          %s369 = ssub.s32 256, 256
          %370 = vsyncadd [#allocation5], %s369
          %s371 = sshll.u32 [#allocation4], 4
          %s372 = int_to_ptr.vmem [resolvable:$true] %s371
          %377 = dma.hbm_to_vmem [thread:$0]  %s8, 256, %s372, [#allocation5], 64, 64, 4
        $region40: #{tpu_custom_call.1} parent=11 // pred_fallthru
          _
        // Predicated region
        $region41: #{tpu_custom_call.1} parent=11 // pred_check
          %p378 = pneg %p259
        $region42: #{tpu_custom_call.1} parent=11 // pred_check_branch
          %380 = sbr.rel (%p378) target = $region44
        $region43: #{tpu_custom_call.1} parent=11 // pred_region
          _
        $region44: #{tpu_custom_call.1} parent=11 // pred_fallthru
          _
        // Predicated region
        $region45: #{tpu_custom_call.1} parent=11 // pred_check
          %p381 = pneg %p280
        $region46: #{tpu_custom_call.1} parent=11 // pred_check_branch
          %383 = sbr.rel (%p381) target = $region48
        $region47: #{tpu_custom_call.1} parent=11 // pred_region
          _
        $region48: #{tpu_custom_call.1} parent=11 // pred_fallthru
          _
        // Predicated region
        $region49: #{tpu_custom_call.1} parent=11 // pred_check
          %p384 = pneg %p301
        $region50: #{tpu_custom_call.1} parent=11 // pred_check_branch
          %386 = sbr.rel (%p384) target = $region52
        $region51: #{tpu_custom_call.1} parent=11 // pred_region
          _
        $region52: #{tpu_custom_call.1} parent=11 // pred_fallthru
          _
      $region12: #{tpu_custom_call.1} parent=5 // pred_fallthru
        _
      %p387 = scmp.lt.s32.totalorder %s22, 2
      // Predicated region
      $region53: #{tpu_custom_call.1} parent=5 // pred_check
        %p388 = pneg %p387
      $region54: #{tpu_custom_call.1} parent=5 // pred_check_branch
        %390 = sbr.rel (%p388) target = $region56
      $region55: #{tpu_custom_call.1} parent=5 // pred_region
        // Predicated region
        $region57: #{tpu_custom_call.1} parent=55 // pred_check
          %p391 = pneg %p54
        $region58: #{tpu_custom_call.1} parent=55 // pred_check_branch
          %393 = sbr.rel (%p391) target = $region60
        $region59: #{tpu_custom_call.1} parent=55 // pred_region
          %p394 = scmp.lt.s32.totalorder %s29, 1
          %s395 = scalar_select %p394, %s29, 1
          %s396 = smul.addr %s395, 8
          %s397 = scalar_lea.vmem %s0, %s396
        $region60: #{tpu_custom_call.1} parent=55 // pred_fallthru
          _
        // Predicated region
        $region61: #{tpu_custom_call.1} parent=55 // pred_check
          %p398 = pneg %p80
        $region62: #{tpu_custom_call.1} parent=55 // pred_check_branch
          %400 = sbr.rel (%p398) target = $region64
        $region63: #{tpu_custom_call.1} parent=55 // pred_region
          %p401 = scmp.lt.s32.totalorder %s29, 1
          %s402 = scalar_select %p401, %s29, 1
          %s403 = scalar_lea.vmem %s1, %s402
        $region64: #{tpu_custom_call.1} parent=55 // pred_fallthru
          _
      $region56: #{tpu_custom_call.1} parent=5 // pred_fallthru
        _
      %p404 = scmp.le.s32.totalorder 1, %s22
      %p405 = scmp.lt.s32.totalorder %s22, 3
      %p406 = pnand %p404, %p405
      %p407 = pneg %p406
      // Predicated region
      $region65: #{tpu_custom_call.1} parent=5 // pred_check
        _
      $region66: #{tpu_custom_call.1} parent=5 // pred_check_branch
        %409 = sbr.rel (%p406) target = $region68
      $region67: #{tpu_custom_call.1} parent=5 // pred_region
        %s410 = ssub.s32 %s22, 1
        // Predicated region
        $region69: #{tpu_custom_call.1} parent=67 // pred_check
          %p411 = pneg %p238
        $region70: #{tpu_custom_call.1} parent=67 // pred_check_branch
          %413 = sbr.rel (%p411) target = $region72
        $region71: #{tpu_custom_call.1} parent=67 // pred_region
          %414 = dma.done [#allocation5], 256
        $region72: #{tpu_custom_call.1} parent=67 // pred_fallthru
          _
        %p415 = scmp.lt.s32.totalorder %s31, 1
        %s416 = scalar_select %p415, %s31, 1
        %s417 = smul.addr %s416, 8
        %s418 = scalar_lea.vmem %s0, %s417
        %p419 = pneg %p60
        %p420 = pneg %p57
        %p421 = scmp.lt.s32.totalorder %s31, 1
        %s422 = scalar_select %p421, %s31, 1
        %s423 = scalar_lea.vmem %s1, %s422
        %p424 = pneg %p86
        %p425 = pneg %p83
        %p426 = scmp.lt.s32.totalorder %s32, 0
        %s427 = scalar_select %p426, %s32, 0
        %s428 = smul.addr %s427, 4
        %s429 = smul.addr %s428, 4
        %s430 = scalar_lea.vmem %s2, %s429
        %p431 = pneg %p112
        %p432 = pneg %p109
        %p433 = pneg %p133
        %p434 = pneg %p130
        %p435 = pneg %p154
        %p436 = pneg %p151
        %p437 = pneg %p175
        %p438 = pneg %p172
        %p439 = pneg %p196
        %p440 = pneg %p193
        %p441 = pneg %p217
        %p442 = pneg %p214
        %p443 = pneg %p238
        %p444 = pneg %p235
        %p445 = pneg %p259
        %p446 = pneg %p256
        %p447 = pneg %p280
        %p448 = pneg %p277
        %p449 = pneg %p301
        %p450 = pneg %p298
        %p451 = pneg %p327
        %p452 = pneg %p324
        %s453 = sand.u32 %s314, 1
        %s454 = scalar_lea.sflag [#allocation6], %s453
        %s455 = sand.u32 %s314, 1
        %s456 = smul.addr %s455, 8
        %s457 = scalar_lea.vmem [#allocation7], %s456
        %p458 = scmp.lt.s32.totalorder %s31, 1
        %s459 = scalar_select %p458, %s31, 1
        %s460 = smul.addr %s459, 8
        %s461 = scalar_lea.vmem %s0, %s460
        %p462 = scmp.lt.s32.totalorder %s31, 1
        %s463 = scalar_select %p462, %s31, 1
        %s464 = scalar_lea.vmem %s1, %s463
        %p465 = scmp.lt.s32.totalorder %s32, 0
        %s466 = scalar_select %p465, %s32, 0
        %s467 = smul.addr %s466, 4
        %s468 = smul.addr %s467, 4
        %s469 = scalar_lea.vmem %s2, %s468
        %p471 = scmp.eq.s32.totalorder %s32, 0
        // Predicated region
        $region73: #{tpu_custom_call.1} parent=67 // pred_check
          %p472 = pneg %p471
        $region74: #{tpu_custom_call.1} parent=67 // pred_check_branch
          %474 = sbr.rel (%p472) target = $region76
        $region75: #{tpu_custom_call.1} parent=67 // pred_region
          %v475 = vld [vmem:[%s461] sm:$0xff]
          %v476 = vld [vmem:[%s4] sm:$0x1]
          %v477 = vld [vmem:[%s5] sm:$0x1]
          %vm478 = vcmask 261120
          %v479 = vsel %vm478, %v475, 0.0
          %480 = vadd.xlane.f32.xlu0 %v479
          %v481 = vpop.xlane.xlu0 %480
          %v482 = vrcp.pop 32.0
          %v483 = vmul.f32 %v481, %v482
          %v484 = vsub.f32 %v475, %v483
          %v485 = vmul.f32 %v484, %v484
          %v486 = vsel %vm478, %v485, 0.0
          %487 = vadd.xlane.f32.xlu0 %v486
          %v488 = vpop.xlane.xlu0 %487
          %v489 = vmul.f32 %v488, 0.032258064
          %v490 = vrsqrt.pop %v489
          %v491 = vmul.f32 %v489, %v490
          %vm492 = vcmp.eq.f32.partialorder %v489, inf
          %v493 = vsel %vm492, %v489, %v491
          %vm494 = vcmp.eq.f32.partialorder %v489, 0.0
          %v495 = vand.u32 %v489, 2147483648
          %v496 = vsel %vm494, %v495, %v493
          %v497 = vadd.f32 %v496, 1e-06
          %v498 = vrcp.pop %v497
          %v499 = vmul.f32 %v484, %v498
          %v501 = vlaneseq
          %v502 = vshrl.u32 %v501, 7
          %v503 = vsub.s32 0, %v502
          %v504 = vrot.slane %v476, %v503
          %v506 = vmul.f32 %v504, %v499
          %v508 = vlaneseq
          %v509 = vshrl.u32 %v508, 7
          %v510 = vsub.s32 0, %v509
          %v511 = vrot.slane %v477, %v510
          %v513 = vadd.f32 %v506, %v511
          %v514 = vpack.c.bf16 %v513, %v513
          %vm515 = vcmask 257024
          %516 = vst.msk [vmem:[#allocation2] sm:$0xf] %vm515, %v514
        $region76: #{tpu_custom_call.1} parent=67 // pred_fallthru
          _
        %v517 = vld [vmem:[#allocation2] sm:$0xf]
        %v518 = vld [vmem:[%s469] sm:$0xf]
        %v519 = vld [vmem:[%s469 + $0x4] sm:$0xf]
        %v520 = vld [vmem:[%s469 + $0x8] sm:$0xf]
        %v521 = vld [vmem:[%s469 + $0xc] sm:$0xf]
        %v526 = vunpack.c.l.b16 %v518
        %v527 = vunpack.c.l.b16 %v519
        %v528 = vunpack.c.l.b16 %v520
        %v529 = vunpack.c.l.b16 %v521
        %v530 = vpack.c.b16 %v527, %v526
        %v531 = vpack.c.b16 %v529, %v528
        %vm534 = vcmask 261120
        %v536 = vsel %vm534, %v517, 0
        %538 = vmatprep.subr.bf16.mxu0 0
        %539 = vmatpush1.bf16.msra.mxu0 %v530
        %540 = vmatprep.subr.bf16.mxu0 0
        %541 = vmatpush1.bf16.msra.mxu0 %v531
        %542 = vmatprep.subr.bf16.mxu0 0
        %543 = vmatpush1.bf16.msra.mxu0 0
        %544 = vmatprep.subr.bf16.mxu0 0
        %545 = vmatpush1.bf16.msra.mxu0 0
        %546 = vmatprep.subr.bf16.mxu0 0
        %547 = vmatpush1.bf16.msra.mxu0 0
        %548 = vmatprep.subr.bf16.mxu0 0
        %549 = vmatpush1.bf16.msra.mxu0 0
        %550 = vmatprep.subr.bf16.mxu0 0
        %551 = vmatpush1.bf16.msra.mxu0 0
        %552 = vmatprep.subr.bf16.mxu0 0
        %553 = vmatpush1.bf16.msra.mxu0 0
        %554 = vmatprep.subr.bf16.mxu0 0
        %555 = vmatpush1.bf16.msra.mxu0 0
        %556 = vmatprep.subr.bf16.mxu0 0
        %557 = vmatpush1.bf16.msra.mxu0 0
        %558 = vmatprep.subr.bf16.mxu0 0
        %559 = vmatpush1.bf16.msra.mxu0 0
        %560 = vmatprep.subr.bf16.mxu0 0
        %561 = vmatpush1.bf16.msra.mxu0 0
        %562 = vmatprep.subr.bf16.mxu0 0
        %563 = vmatpush1.bf16.msra.mxu0 0
        %564 = vmatprep.subr.bf16.mxu0 0
        %565 = vmatpush1.bf16.msra.mxu0 0
        %566 = vmatprep.subr.bf16.mxu0 0
        %567 = vmatpush1.bf16.msra.mxu0 0
        %568 = vmatprep.subr.bf16.mxu0 0
        %569 = vmatpush1.bf16.msra.mxu0 0
        %570 = vmatprep.mubr.bf16.mxu0 0
        %571 = vmatmul.mubr.bf16.gmra.mrb[0].mxu0 %v536
        %v572 = vpop.f32.mrb[0].mxu0
        %v573 = vadd.f32 0.0, %v572
        %v574 = vpop.f32.mrb[0].mxu0
        %v575 = vpop.f32.mrb[0].mxu0
        %v576 = vpop.f32.mrb[0].mxu0
        %577 = vdwg.mxu0
        %v578 = vpack.c.bf16 %v573, %v573
        %v579 = vld [vmem:[%s464] sm:$0x1]
        %v581 = vlaneseq
        %v582 = vshrl.u32 %v581, 7
        %v583 = vsub.s32 0, %v582
        %v584 = vrot.slane %v579, %v583
        %587 = vrot.lane.b32.xlu0 %v578, 96
        %v588 = vpop.permute.xlu0 %587
        %vm589 = vcmask 64512
        %v591 = vsel %vm589, %v578, 0
        %v594 = vsel %vm589, %v588, 0
        %596 = vmatprep.subr.bf16.mxu0 0
        %597 = vmatpush1.bf16.xpose.msra.mxu0 %v594
        %598 = vmatprep.subr.bf16.mxu0 0
        %599 = vmatpush1.bf16.xpose.msra.mxu0 0
        %600 = vmatprep.subr.bf16.mxu0 0
        %601 = vmatpush1.bf16.xpose.msra.mxu0 0
        %602 = vmatprep.subr.bf16.mxu0 0
        %603 = vmatpush1.bf16.xpose.msra.mxu0 0
        %604 = vmatprep.subr.bf16.mxu0 0
        %605 = vmatpush1.bf16.xpose.msra.mxu0 0
        %606 = vmatprep.subr.bf16.mxu0 0
        %607 = vmatpush1.bf16.xpose.msra.mxu0 0
        %608 = vmatprep.subr.bf16.mxu0 0
        %609 = vmatpush1.bf16.xpose.msra.mxu0 0
        %610 = vmatprep.subr.bf16.mxu0 0
        %611 = vmatpush1.bf16.xpose.msra.mxu0 0
        %612 = vmatprep.subr.bf16.mxu0 0
        %613 = vmatpush1.bf16.xpose.msra.mxu0 0
        %614 = vmatprep.subr.bf16.mxu0 0
        %615 = vmatpush1.bf16.xpose.msra.mxu0 0
        %616 = vmatprep.subr.bf16.mxu0 0
        %617 = vmatpush1.bf16.xpose.msra.mxu0 0
        %618 = vmatprep.subr.bf16.mxu0 0
        %619 = vmatpush1.bf16.xpose.msra.mxu0 0
        %620 = vmatprep.subr.bf16.mxu0 0
        %621 = vmatpush1.bf16.xpose.msra.mxu0 0
        %622 = vmatprep.subr.bf16.mxu0 0
        %623 = vmatpush1.bf16.xpose.msra.mxu0 0
        %624 = vmatprep.subr.bf16.mxu0 0
        %625 = vmatpush1.bf16.xpose.msra.mxu0 0
        %626 = vmatprep.subr.bf16.mxu0 0
        %627 = vmatpush1.bf16.xpose.msra.mxu0 0
        %628 = vmatprep.mubr.bf16.mxu0 0
        %629 = vmatmul.mubr.bf16.gmra.mrb[0].mxu0 %v591
        %v630 = vpop.f32.mrb[0].mxu0
        %v631 = vadd.f32 %v584, %v630
        %v632 = vpop.f32.mrb[0].mxu0
        %v633 = vpop.f32.mrb[0].mxu0
        %v634 = vpop.f32.mrb[0].mxu0
        %635 = vdwg.mxu0
        %v636 = vsel %vm589, %v631, -inf
        %637 = vmax.xlane.f32.xlu0 %v636
        %v638 = vpop.xlane.xlu0 %637
        %v639 = vsub.f32 %v631, %v638
        %v640 = vmul.f32 %v639, 1.442695
        %v641 = vpow.pop %v640
        %v642 = vsel %vm589, %v641, 0.0
        %643 = vadd.xlane.f32.xlu0 %v642
        %v644 = vpop.xlane.xlu0 %643
        %v645 = vrcp.pop %v644
        %v646 = vpack.c.bf16 %v641, %v641
        %647 = vrot.lane.b32.xlu0 %v578, 64
        %v648 = vpop.permute.xlu0 %647
        %v650 = vsel %vm589, %v646, 0
        %vm652 = vcmask 1043456
        %v654 = vsel %vm652, %v648, 0
        %656 = vmatprep.subr.bf16.mxu0 0
        %657 = vmatpush1.bf16.msra.mxu0 %v654
        %658 = vmatprep.subr.bf16.mxu0 0
        %659 = vmatpush1.bf16.msra.mxu0 0
        %660 = vmatprep.subr.bf16.mxu0 0
        %661 = vmatpush1.bf16.msra.mxu0 0
        %662 = vmatprep.subr.bf16.mxu0 0
        %663 = vmatpush1.bf16.msra.mxu0 0
        %664 = vmatprep.subr.bf16.mxu0 0
        %665 = vmatpush1.bf16.msra.mxu0 0
        %666 = vmatprep.subr.bf16.mxu0 0
        %667 = vmatpush1.bf16.msra.mxu0 0
        %668 = vmatprep.subr.bf16.mxu0 0
        %669 = vmatpush1.bf16.msra.mxu0 0
        %670 = vmatprep.subr.bf16.mxu0 0
        %671 = vmatpush1.bf16.msra.mxu0 0
        %672 = vmatprep.subr.bf16.mxu0 0
        %673 = vmatpush1.bf16.msra.mxu0 0
        %674 = vmatprep.subr.bf16.mxu0 0
        %675 = vmatpush1.bf16.msra.mxu0 0
        %676 = vmatprep.subr.bf16.mxu0 0
        %677 = vmatpush1.bf16.msra.mxu0 0
        %678 = vmatprep.subr.bf16.mxu0 0
        %679 = vmatpush1.bf16.msra.mxu0 0
        %680 = vmatprep.subr.bf16.mxu0 0
        %681 = vmatpush1.bf16.msra.mxu0 0
        %682 = vmatprep.subr.bf16.mxu0 0
        %683 = vmatpush1.bf16.msra.mxu0 0
        %684 = vmatprep.subr.bf16.mxu0 0
        %685 = vmatpush1.bf16.msra.mxu0 0
        %686 = vmatprep.subr.bf16.mxu0 0
        %687 = vmatpush1.bf16.msra.mxu0 0
        %688 = vmatprep.mubr.bf16.mxu0 0
        %689 = vmatmul.mubr.bf16.gmra.mrb[0].mxu0 %v650
        %v690 = vpop.f32.mrb[0].mxu0
        %v691 = vadd.f32 0.0, %v690
        %v692 = vpop.f32.mrb[0].mxu0
        %v693 = vpop.f32.mrb[0].mxu0
        %v694 = vpop.f32.mrb[0].mxu0
        %695 = vdwg.mxu0
        %v696 = vmul.f32 %v691, %v645
        %v697 = vpack.c.bf16 %v696, %v696
        %698 = vrot.lane.b32.xlu0 %v578, 120
        %v699 = vpop.permute.xlu0 %698
        %700 = vrot.lane.b32.xlu0 %v578, 88
        %v701 = vpop.permute.xlu0 %700
        %v703 = vsel %vm589, %v699, 0
        %v706 = vsel %vm589, %v701, 0
        %708 = vmatprep.subr.bf16.mxu0 0
        %709 = vmatpush1.bf16.xpose.msra.mxu0 %v706
        %710 = vmatprep.subr.bf16.mxu0 0
        %711 = vmatpush1.bf16.xpose.msra.mxu0 0
        %712 = vmatprep.subr.bf16.mxu0 0
        %713 = vmatpush1.bf16.xpose.msra.mxu0 0
        %714 = vmatprep.subr.bf16.mxu0 0
        %715 = vmatpush1.bf16.xpose.msra.mxu0 0
        %716 = vmatprep.subr.bf16.mxu0 0
        %717 = vmatpush1.bf16.xpose.msra.mxu0 0
        %718 = vmatprep.subr.bf16.mxu0 0
        %719 = vmatpush1.bf16.xpose.msra.mxu0 0
        %720 = vmatprep.subr.bf16.mxu0 0
        %721 = vmatpush1.bf16.xpose.msra.mxu0 0
        %722 = vmatprep.subr.bf16.mxu0 0
        %723 = vmatpush1.bf16.xpose.msra.mxu0 0
        %724 = vmatprep.subr.bf16.mxu0 0
        %725 = vmatpush1.bf16.xpose.msra.mxu0 0
        %726 = vmatprep.subr.bf16.mxu0 0
        %727 = vmatpush1.bf16.xpose.msra.mxu0 0
        %728 = vmatprep.subr.bf16.mxu0 0
        %729 = vmatpush1.bf16.xpose.msra.mxu0 0
        %730 = vmatprep.subr.bf16.mxu0 0
        %731 = vmatpush1.bf16.xpose.msra.mxu0 0
        %732 = vmatprep.subr.bf16.mxu0 0
        %733 = vmatpush1.bf16.xpose.msra.mxu0 0
        %734 = vmatprep.subr.bf16.mxu0 0
        %735 = vmatpush1.bf16.xpose.msra.mxu0 0
        %736 = vmatprep.subr.bf16.mxu0 0
        %737 = vmatpush1.bf16.xpose.msra.mxu0 0
        %738 = vmatprep.subr.bf16.mxu0 0
        %739 = vmatpush1.bf16.xpose.msra.mxu0 0
        %740 = vmatprep.mubr.bf16.mxu0 0
        %741 = vmatmul.mubr.bf16.gmra.mrb[0].mxu0 %v703
        %v742 = vpop.f32.mrb[0].mxu0
        %v743 = vadd.f32 %v584, %v742
        %v744 = vpop.f32.mrb[0].mxu0
        %v745 = vpop.f32.mrb[0].mxu0
        %v746 = vpop.f32.mrb[0].mxu0
        %747 = vdwg.mxu0
        %v748 = vsel %vm589, %v743, -inf
        %749 = vmax.xlane.f32.xlu0 %v748
        %v750 = vpop.xlane.xlu0 %749
        %v751 = vsub.f32 %v743, %v750
        %v752 = vmul.f32 %v751, 1.442695
        %v753 = vpow.pop %v752
        %v754 = vsel %vm589, %v753, 0.0
        %755 = vadd.xlane.f32.xlu0 %v754
        %v756 = vpop.xlane.xlu0 %755
        %v757 = vrcp.pop %v756
        %v758 = vpack.c.bf16 %v753, %v753
        %759 = vrot.lane.b32.xlu0 %v578, 56
        %v760 = vpop.permute.xlu0 %759
        %v762 = vsel %vm589, %v758, 0
        %v765 = vsel %vm652, %v760, 0
        %767 = vmatprep.subr.bf16.mxu0 0
        %768 = vmatpush1.bf16.msra.mxu0 %v765
        %769 = vmatprep.subr.bf16.mxu0 0
        %770 = vmatpush1.bf16.msra.mxu0 0
        %771 = vmatprep.subr.bf16.mxu0 0
        %772 = vmatpush1.bf16.msra.mxu0 0
        %773 = vmatprep.subr.bf16.mxu0 0
        %774 = vmatpush1.bf16.msra.mxu0 0
        %775 = vmatprep.subr.bf16.mxu0 0
        %776 = vmatpush1.bf16.msra.mxu0 0
        %777 = vmatprep.subr.bf16.mxu0 0
        %778 = vmatpush1.bf16.msra.mxu0 0
        %779 = vmatprep.subr.bf16.mxu0 0
        %780 = vmatpush1.bf16.msra.mxu0 0
        %781 = vmatprep.subr.bf16.mxu0 0
        %782 = vmatpush1.bf16.msra.mxu0 0
        %783 = vmatprep.subr.bf16.mxu0 0
        %784 = vmatpush1.bf16.msra.mxu0 0
        %785 = vmatprep.subr.bf16.mxu0 0
        %786 = vmatpush1.bf16.msra.mxu0 0
        %787 = vmatprep.subr.bf16.mxu0 0
        %788 = vmatpush1.bf16.msra.mxu0 0
        %789 = vmatprep.subr.bf16.mxu0 0
        %790 = vmatpush1.bf16.msra.mxu0 0
        %791 = vmatprep.subr.bf16.mxu0 0
        %792 = vmatpush1.bf16.msra.mxu0 0
        %793 = vmatprep.subr.bf16.mxu0 0
        %794 = vmatpush1.bf16.msra.mxu0 0
        %795 = vmatprep.subr.bf16.mxu0 0
        %796 = vmatpush1.bf16.msra.mxu0 0
        %797 = vmatprep.subr.bf16.mxu0 0
        %798 = vmatpush1.bf16.msra.mxu0 0
        %799 = vmatprep.mubr.bf16.mxu0 0
        %800 = vmatmul.mubr.bf16.gmra.mrb[0].mxu0 %v762
        %v801 = vpop.f32.mrb[0].mxu0
        %v802 = vadd.f32 0.0, %v801
        %v803 = vpop.f32.mrb[0].mxu0
        %v804 = vpop.f32.mrb[0].mxu0
        %v805 = vpop.f32.mrb[0].mxu0
        %806 = vdwg.mxu0
        %v807 = vmul.f32 %v802, %v757
        %v808 = vpack.c.bf16 %v807, %v807
        %809 = vrot.lane.b32.xlu0 %v578, 112
        %v810 = vpop.permute.xlu0 %809
        %811 = vrot.lane.b32.xlu0 %v578, 80
        %v812 = vpop.permute.xlu0 %811
        %v814 = vsel %vm589, %v810, 0
        %v817 = vsel %vm589, %v812, 0
        %819 = vmatprep.subr.bf16.mxu0 0
        %820 = vmatpush1.bf16.xpose.msra.mxu0 %v817
        %821 = vmatprep.subr.bf16.mxu0 0
        %822 = vmatpush1.bf16.xpose.msra.mxu0 0
        %823 = vmatprep.subr.bf16.mxu0 0
        %824 = vmatpush1.bf16.xpose.msra.mxu0 0
        %825 = vmatprep.subr.bf16.mxu0 0
        %826 = vmatpush1.bf16.xpose.msra.mxu0 0
        %827 = vmatprep.subr.bf16.mxu0 0
        %828 = vmatpush1.bf16.xpose.msra.mxu0 0
        %829 = vmatprep.subr.bf16.mxu0 0
        %830 = vmatpush1.bf16.xpose.msra.mxu0 0
        %831 = vmatprep.subr.bf16.mxu0 0
        %832 = vmatpush1.bf16.xpose.msra.mxu0 0
        %833 = vmatprep.subr.bf16.mxu0 0
        %834 = vmatpush1.bf16.xpose.msra.mxu0 0
        %835 = vmatprep.subr.bf16.mxu0 0
        %836 = vmatpush1.bf16.xpose.msra.mxu0 0
        %837 = vmatprep.subr.bf16.mxu0 0
        %838 = vmatpush1.bf16.xpose.msra.mxu0 0
        %839 = vmatprep.subr.bf16.mxu0 0
        %840 = vmatpush1.bf16.xpose.msra.mxu0 0
        %841 = vmatprep.subr.bf16.mxu0 0
        %842 = vmatpush1.bf16.xpose.msra.mxu0 0
        %843 = vmatprep.subr.bf16.mxu0 0
        %844 = vmatpush1.bf16.xpose.msra.mxu0 0
        %845 = vmatprep.subr.bf16.mxu0 0
        %846 = vmatpush1.bf16.xpose.msra.mxu0 0
        %847 = vmatprep.subr.bf16.mxu0 0
        %848 = vmatpush1.bf16.xpose.msra.mxu0 0
        %849 = vmatprep.subr.bf16.mxu0 0
        %850 = vmatpush1.bf16.xpose.msra.mxu0 0
        %851 = vmatprep.mubr.bf16.mxu0 0
        %852 = vmatmul.mubr.bf16.gmra.mrb[0].mxu0 %v814
        %v853 = vpop.f32.mrb[0].mxu0
        %v854 = vadd.f32 %v584, %v853
        %v855 = vpop.f32.mrb[0].mxu0
        %v856 = vpop.f32.mrb[0].mxu0
        %v857 = vpop.f32.mrb[0].mxu0
        %858 = vdwg.mxu0
        %v859 = vsel %vm589, %v854, -inf
        %860 = vmax.xlane.f32.xlu0 %v859
        %v861 = vpop.xlane.xlu0 %860
        %v862 = vsub.f32 %v854, %v861
        %v863 = vmul.f32 %v862, 1.442695
        %v864 = vpow.pop %v863
        %v865 = vsel %vm589, %v864, 0.0
        %866 = vadd.xlane.f32.xlu0 %v865
        %v867 = vpop.xlane.xlu0 %866
        %v868 = vrcp.pop %v867
        %v869 = vpack.c.bf16 %v864, %v864
        %870 = vrot.lane.b32.xlu0 %v578, 48
        %v871 = vpop.permute.xlu0 %870
        %v873 = vsel %vm589, %v869, 0
        %v876 = vsel %vm652, %v871, 0
        %878 = vmatprep.subr.bf16.mxu0 0
        %879 = vmatpush1.bf16.msra.mxu0 %v876
        %880 = vmatprep.subr.bf16.mxu0 0
        %881 = vmatpush1.bf16.msra.mxu0 0
        %882 = vmatprep.subr.bf16.mxu0 0
        %883 = vmatpush1.bf16.msra.mxu0 0
        %884 = vmatprep.subr.bf16.mxu0 0
        %885 = vmatpush1.bf16.msra.mxu0 0
        %886 = vmatprep.subr.bf16.mxu0 0
        %887 = vmatpush1.bf16.msra.mxu0 0
        %888 = vmatprep.subr.bf16.mxu0 0
        %889 = vmatpush1.bf16.msra.mxu0 0
        %890 = vmatprep.subr.bf16.mxu0 0
        %891 = vmatpush1.bf16.msra.mxu0 0
        %892 = vmatprep.subr.bf16.mxu0 0
        %893 = vmatpush1.bf16.msra.mxu0 0
        %894 = vmatprep.subr.bf16.mxu0 0
        %895 = vmatpush1.bf16.msra.mxu0 0
        %896 = vmatprep.subr.bf16.mxu0 0
        %897 = vmatpush1.bf16.msra.mxu0 0
        %898 = vmatprep.subr.bf16.mxu0 0
        %899 = vmatpush1.bf16.msra.mxu0 0
        %900 = vmatprep.subr.bf16.mxu0 0
        %901 = vmatpush1.bf16.msra.mxu0 0
        %902 = vmatprep.subr.bf16.mxu0 0
        %903 = vmatpush1.bf16.msra.mxu0 0
        %904 = vmatprep.subr.bf16.mxu0 0
        %905 = vmatpush1.bf16.msra.mxu0 0
        %906 = vmatprep.subr.bf16.mxu0 0
        %907 = vmatpush1.bf16.msra.mxu0 0
        %908 = vmatprep.subr.bf16.mxu0 0
        %909 = vmatpush1.bf16.msra.mxu0 0
        %910 = vmatprep.mubr.bf16.mxu0 0
        %911 = vmatmul.mubr.bf16.gmra.mrb[0].mxu0 %v873
        %v912 = vpop.f32.mrb[0].mxu0
        %v913 = vadd.f32 0.0, %v912
        %v914 = vpop.f32.mrb[0].mxu0
        %v915 = vpop.f32.mrb[0].mxu0
        %v916 = vpop.f32.mrb[0].mxu0
        %917 = vdwg.mxu0
        %v918 = vmul.f32 %v913, %v868
        %v919 = vpack.c.bf16 %v918, %v918
        %920 = vrot.lane.b32.xlu0 %v578, 104
        %v921 = vpop.permute.xlu0 %920
        %922 = vrot.lane.b32.xlu0 %v578, 72
        %v923 = vpop.permute.xlu0 %922
        %v925 = vsel %vm589, %v921, 0
        %v928 = vsel %vm589, %v923, 0
        %930 = vmatprep.subr.bf16.mxu0 0
        %931 = vmatpush1.bf16.xpose.msra.mxu0 %v928
        %932 = vmatprep.subr.bf16.mxu0 0
        %933 = vmatpush1.bf16.xpose.msra.mxu0 0
        %934 = vmatprep.subr.bf16.mxu0 0
        %935 = vmatpush1.bf16.xpose.msra.mxu0 0
        %936 = vmatprep.subr.bf16.mxu0 0
        %937 = vmatpush1.bf16.xpose.msra.mxu0 0
        %938 = vmatprep.subr.bf16.mxu0 0
        %939 = vmatpush1.bf16.xpose.msra.mxu0 0
        %940 = vmatprep.subr.bf16.mxu0 0
        %941 = vmatpush1.bf16.xpose.msra.mxu0 0
        %942 = vmatprep.subr.bf16.mxu0 0
        %943 = vmatpush1.bf16.xpose.msra.mxu0 0
        %944 = vmatprep.subr.bf16.mxu0 0
        %945 = vmatpush1.bf16.xpose.msra.mxu0 0
        %946 = vmatprep.subr.bf16.mxu0 0
        %947 = vmatpush1.bf16.xpose.msra.mxu0 0
        %948 = vmatprep.subr.bf16.mxu0 0
        %949 = vmatpush1.bf16.xpose.msra.mxu0 0
        %950 = vmatprep.subr.bf16.mxu0 0
        %951 = vmatpush1.bf16.xpose.msra.mxu0 0
        %952 = vmatprep.subr.bf16.mxu0 0
        %953 = vmatpush1.bf16.xpose.msra.mxu0 0
        %954 = vmatprep.subr.bf16.mxu0 0
        %955 = vmatpush1.bf16.xpose.msra.mxu0 0
        %956 = vmatprep.subr.bf16.mxu0 0
        %957 = vmatpush1.bf16.xpose.msra.mxu0 0
        %958 = vmatprep.subr.bf16.mxu0 0
        %959 = vmatpush1.bf16.xpose.msra.mxu0 0
        %960 = vmatprep.subr.bf16.mxu0 0
        %961 = vmatpush1.bf16.xpose.msra.mxu0 0
        %962 = vmatprep.mubr.bf16.mxu0 0
        %963 = vmatmul.mubr.bf16.gmra.mrb[0].mxu0 %v925
        %v964 = vpop.f32.mrb[0].mxu0
        %v965 = vadd.f32 %v584, %v964
        %v966 = vpop.f32.mrb[0].mxu0
        %v967 = vpop.f32.mrb[0].mxu0
        %v968 = vpop.f32.mrb[0].mxu0
        %969 = vdwg.mxu0
        %v970 = vsel %vm589, %v965, -inf
        %971 = vmax.xlane.f32.xlu0 %v970
        %v972 = vpop.xlane.xlu0 %971
        %v973 = vsub.f32 %v965, %v972
        %v974 = vmul.f32 %v973, 1.442695
        %v975 = vpow.pop %v974
        %v976 = vsel %vm589, %v975, 0.0
        %977 = vadd.xlane.f32.xlu0 %v976
        %v978 = vpop.xlane.xlu0 %977
        %v979 = vrcp.pop %v978
        %v980 = vpack.c.bf16 %v975, %v975
        %981 = vrot.lane.b32.xlu0 %v578, 40
        %v982 = vpop.permute.xlu0 %981
        %v984 = vsel %vm589, %v980, 0
        %v987 = vsel %vm652, %v982, 0
        %989 = vmatprep.subr.bf16.mxu0 0
        %990 = vmatpush1.bf16.msra.mxu0 %v987
        %991 = vmatprep.subr.bf16.mxu0 0
        %992 = vmatpush1.bf16.msra.mxu0 0
        %993 = vmatprep.subr.bf16.mxu0 0
        %994 = vmatpush1.bf16.msra.mxu0 0
        %995 = vmatprep.subr.bf16.mxu0 0
        %996 = vmatpush1.bf16.msra.mxu0 0
        %997 = vmatprep.subr.bf16.mxu0 0
        %998 = vmatpush1.bf16.msra.mxu0 0
        %999 = vmatprep.subr.bf16.mxu0 0
        %1000 = vmatpush1.bf16.msra.mxu0 0
        %1001 = vmatprep.subr.bf16.mxu0 0
        %1002 = vmatpush1.bf16.msra.mxu0 0
        %1003 = vmatprep.subr.bf16.mxu0 0
        %1004 = vmatpush1.bf16.msra.mxu0 0
        %1005 = vmatprep.subr.bf16.mxu0 0
        %1006 = vmatpush1.bf16.msra.mxu0 0
        %1007 = vmatprep.subr.bf16.mxu0 0
        %1008 = vmatpush1.bf16.msra.mxu0 0
        %1009 = vmatprep.subr.bf16.mxu0 0
        %1010 = vmatpush1.bf16.msra.mxu0 0
        %1011 = vmatprep.subr.bf16.mxu0 0
        %1012 = vmatpush1.bf16.msra.mxu0 0
        %1013 = vmatprep.subr.bf16.mxu0 0
        %1014 = vmatpush1.bf16.msra.mxu0 0
        %1015 = vmatprep.subr.bf16.mxu0 0
        %1016 = vmatpush1.bf16.msra.mxu0 0
        %1017 = vmatprep.subr.bf16.mxu0 0
        %1018 = vmatpush1.bf16.msra.mxu0 0
        %1019 = vmatprep.subr.bf16.mxu0 0
        %1020 = vmatpush1.bf16.msra.mxu0 0
        %1021 = vmatprep.mubr.bf16.mxu0 0
        %1022 = vmatmul.mubr.bf16.gmra.mrb[0].mxu0 %v984
        %v1023 = vpop.f32.mrb[0].mxu0
        %v1024 = vadd.f32 0.0, %v1023
        %v1025 = vpop.f32.mrb[0].mxu0
        %v1026 = vpop.f32.mrb[0].mxu0
        %v1027 = vpop.f32.mrb[0].mxu0
        %1028 = vdwg.mxu0
        %v1029 = vmul.f32 %v1024, %v979
        %v1030 = vpack.c.bf16 %v1029, %v1029
        %1032 = vrot.lane.b32.xlu0 %v808, 8
        %v1033 = vpop.permute.xlu0 %1032
        %1035 = vrot.lane.b32.xlu0 %v919, 16
        %v1036 = vpop.permute.xlu0 %1035
        %1038 = vrot.lane.b32.xlu0 %v1030, 24
        %v1039 = vpop.permute.xlu0 %1038
        %v1042 = vsel %vm589, %v697, %v1033
        %vm1043 = vcmask 130048
        %v1045 = vsel %vm1043, %v1042, %v1036
        %vm1046 = vcmask 195584
        %v1048 = vsel %vm1046, %v1045, %v1039
        %s1050 = smul.addr %s32, 4
        %s1051 = scalar_lea.vmem [#allocation3], %s1050
        %vm1052 = vcmask 257024
        %1053 = vst.msk [vmem:[%s1051] sm:$0xf] %vm1052, %v1048
        // Predicated region
        $region77: #{tpu_custom_call.1} parent=67 // pred_check
          %p1054 = pneg %p471
        $region78: #{tpu_custom_call.1} parent=67 // pred_check_branch
          %1056 = sbr.rel (%p1054) target = $region80
        $region79: #{tpu_custom_call.1} parent=67 // pred_region
          %v1057 = vld [vmem:[%s461] sm:$0xff]
          %v1058 = vld [vmem:[#allocation3] sm:$0xf]
          %v1059 = vld [vmem:[%s3] sm:$0xf]
          %v1060 = vld [vmem:[%s3 + $0x4] sm:$0xf]
          %v1061 = vld [vmem:[%s3 + $0x8] sm:$0xf]
          %v1062 = vld [vmem:[%s3 + $0xc] sm:$0xf]
          %v1067 = vunpack.c.l.b16 %v1059
          %v1068 = vunpack.c.l.b16 %v1060
          %v1069 = vunpack.c.l.b16 %v1061
          %v1070 = vunpack.c.l.b16 %v1062
          %v1071 = vpack.c.b16 %v1068, %v1067
          %v1072 = vpack.c.b16 %v1070, %v1069
          %v1076 = vsel %vm534, %v1058, 0
          %1078 = vmatprep.subr.bf16.mxu0 0
          %1079 = vmatpush1.bf16.msra.mxu0 %v1071
          %1080 = vmatprep.subr.bf16.mxu0 0
          %1081 = vmatpush1.bf16.msra.mxu0 %v1072
          %1082 = vmatprep.subr.bf16.mxu0 0
          %1083 = vmatpush1.bf16.msra.mxu0 0
          %1084 = vmatprep.subr.bf16.mxu0 0
          %1085 = vmatpush1.bf16.msra.mxu0 0
          %1086 = vmatprep.subr.bf16.mxu0 0
          %1087 = vmatpush1.bf16.msra.mxu0 0
          %1088 = vmatprep.subr.bf16.mxu0 0
          %1089 = vmatpush1.bf16.msra.mxu0 0
          %1090 = vmatprep.subr.bf16.mxu0 0
          %1091 = vmatpush1.bf16.msra.mxu0 0
          %1092 = vmatprep.subr.bf16.mxu0 0
          %1093 = vmatpush1.bf16.msra.mxu0 0
          %1094 = vmatprep.subr.bf16.mxu0 0
          %1095 = vmatpush1.bf16.msra.mxu0 0
          %1096 = vmatprep.subr.bf16.mxu0 0
          %1097 = vmatpush1.bf16.msra.mxu0 0
          %1098 = vmatprep.subr.bf16.mxu0 0
          %1099 = vmatpush1.bf16.msra.mxu0 0
          %1100 = vmatprep.subr.bf16.mxu0 0
          %1101 = vmatpush1.bf16.msra.mxu0 0
          %1102 = vmatprep.subr.bf16.mxu0 0
          %1103 = vmatpush1.bf16.msra.mxu0 0
          %1104 = vmatprep.subr.bf16.mxu0 0
          %1105 = vmatpush1.bf16.msra.mxu0 0
          %1106 = vmatprep.subr.bf16.mxu0 0
          %1107 = vmatpush1.bf16.msra.mxu0 0
          %1108 = vmatprep.subr.bf16.mxu0 0
          %1109 = vmatpush1.bf16.msra.mxu0 0
          %1110 = vmatprep.mubr.bf16.mxu0 0
          %1111 = vmatmul.mubr.bf16.gmra.mrb[0].mxu0 %v1076
          %v1112 = vpop.f32.mrb[0].mxu0
          %v1113 = vadd.f32 0.0, %v1112
          %v1114 = vpop.f32.mrb[0].mxu0
          %v1115 = vpop.f32.mrb[0].mxu0
          %v1116 = vpop.f32.mrb[0].mxu0
          %1117 = vdwg.mxu0
          %v1118 = vadd.f32 %v1057, %v1113
          %v1119 = vld [vmem:[%s6] sm:$0x1]
          %v1120 = vld [vmem:[%s7] sm:$0x1]
          %v1121 = vsel %vm534, %v1118, 0.0
          %1122 = vadd.xlane.f32.xlu0 %v1121
          %v1123 = vpop.xlane.xlu0 %1122
          %v1124 = vrcp.pop 32.0
          %v1125 = vmul.f32 %v1123, %v1124
          %v1126 = vsub.f32 %v1118, %v1125
          %v1127 = vmul.f32 %v1126, %v1126
          %v1128 = vsel %vm534, %v1127, 0.0
          %1129 = vadd.xlane.f32.xlu0 %v1128
          %v1130 = vpop.xlane.xlu0 %1129
          %v1131 = vmul.f32 %v1130, 0.032258064
          %v1132 = vrsqrt.pop %v1131
          %v1133 = vmul.f32 %v1131, %v1132
          %vm1134 = vcmp.eq.f32.partialorder %v1131, inf
          %v1135 = vsel %vm1134, %v1131, %v1133
          %vm1136 = vcmp.eq.f32.partialorder %v1131, 0.0
          %v1137 = vand.u32 %v1131, 2147483648
          %v1138 = vsel %vm1136, %v1137, %v1135
          %v1139 = vadd.f32 %v1138, 1e-06
          %v1140 = vrcp.pop %v1139
          %v1141 = vmul.f32 %v1126, %v1140
          %v1143 = vlaneseq
          %v1144 = vshrl.u32 %v1143, 7
          %v1145 = vsub.s32 0, %v1144
          %v1146 = vrot.slane %v1119, %v1145
          %v1148 = vmul.f32 %v1146, %v1141
          %v1150 = vlaneseq
          %v1151 = vshrl.u32 %v1150, 7
          %v1152 = vsub.s32 0, %v1151
          %v1153 = vrot.slane %v1120, %v1152
          %v1155 = vadd.f32 %v1148, %v1153
          %v1156 = vpack.c.bf16 %v1155, %v1155
          %v1157 = vld [vmem:[#allocation4] sm:$0xf]
          %v1158 = vld [vmem:[#allocation4 + $0x4] sm:$0xf]
          %v1159 = vld [vmem:[#allocation4 + $0x8] sm:$0xf]
          %v1160 = vld [vmem:[#allocation4 + $0xc] sm:$0xf]
          %v1161 = vld [vmem:[%s9] sm:$0x1]
          %v1163 = vlaneseq
          %v1164 = vshrl.u32 %v1163, 7
          %v1165 = vsub.s32 0, %v1164
          %v1166 = vrot.slane %v1161, %v1165
          %v1172 = vunpack.c.l.b16 %v1157
          %v1173 = vunpack.c.l.b16 %v1158
          %v1174 = vunpack.c.l.b16 %v1159
          %v1175 = vunpack.c.l.b16 %v1160
          %v1176 = vpack.c.b16 %v1173, %v1172
          %v1177 = vpack.c.b16 %v1175, %v1174
          %v1181 = vsel %vm534, %v1156, 0
          %1183 = vmatprep.subr.bf16.mxu0 0
          %1184 = vmatpush1.bf16.msra.mxu0 %v1176
          %1185 = vmatprep.subr.bf16.mxu0 0
          %1186 = vmatpush1.bf16.msra.mxu0 %v1177
          %1187 = vmatprep.subr.bf16.mxu0 0
          %1188 = vmatpush1.bf16.msra.mxu0 0
          %1189 = vmatprep.subr.bf16.mxu0 0
          %1190 = vmatpush1.bf16.msra.mxu0 0
          %1191 = vmatprep.subr.bf16.mxu0 0
          %1192 = vmatpush1.bf16.msra.mxu0 0
          %1193 = vmatprep.subr.bf16.mxu0 0
          %1194 = vmatpush1.bf16.msra.mxu0 0
          %1195 = vmatprep.subr.bf16.mxu0 0
          %1196 = vmatpush1.bf16.msra.mxu0 0
          %1197 = vmatprep.subr.bf16.mxu0 0
          %1198 = vmatpush1.bf16.msra.mxu0 0
          %1199 = vmatprep.subr.bf16.mxu0 0
          %1200 = vmatpush1.bf16.msra.mxu0 0
          %1201 = vmatprep.subr.bf16.mxu0 0
          %1202 = vmatpush1.bf16.msra.mxu0 0
          %1203 = vmatprep.subr.bf16.mxu0 0
          %1204 = vmatpush1.bf16.msra.mxu0 0
          %1205 = vmatprep.subr.bf16.mxu0 0
          %1206 = vmatpush1.bf16.msra.mxu0 0
          %1207 = vmatprep.subr.bf16.mxu0 0
          %1208 = vmatpush1.bf16.msra.mxu0 0
          %1209 = vmatprep.subr.bf16.mxu0 0
          %1210 = vmatpush1.bf16.msra.mxu0 0
          %1211 = vmatprep.subr.bf16.mxu0 0
          %1212 = vmatpush1.bf16.msra.mxu0 0
          %1213 = vmatprep.subr.bf16.mxu0 0
          %1214 = vmatpush1.bf16.msra.mxu0 0
          %1215 = vmatprep.mubr.bf16.mxu0 0
          %1216 = vmatmul.mubr.bf16.gmra.mrb[0].mxu0 %v1181
          %v1217 = vpop.f32.mrb[0].mxu0
          %v1218 = vadd.f32 %v1166, %v1217
          %v1219 = vpop.f32.mrb[0].mxu0
          %v1220 = vpop.f32.mrb[0].mxu0
          %v1221 = vpop.f32.mrb[0].mxu0
          %1222 = vdwg.mxu0
          %v1223 = vmax.f32 %v1218, 0.0
          %v1224 = vpack.c.bf16 %v1223, %v1223
          %v1225 = vld [vmem:[%s10] sm:$0xf]
          %v1226 = vld [vmem:[%s10 + $0x4] sm:$0xf]
          %v1227 = vld [vmem:[%s10 + $0x8] sm:$0xf]
          %v1228 = vld [vmem:[%s10 + $0xc] sm:$0xf]
          %v1229 = vld [vmem:[%s10 + $0x10] sm:$0xf]
          %v1230 = vld [vmem:[%s10 + $0x14] sm:$0xf]
          %v1231 = vld [vmem:[%s10 + $0x18] sm:$0xf]
          %v1232 = vld [vmem:[%s10 + $0x1c] sm:$0xf]
          %v1233 = vld [vmem:[%s11] sm:$0x1]
          %v1235 = vlaneseq
          %v1236 = vshrl.u32 %v1235, 7
          %v1237 = vsub.s32 0, %v1236
          %v1238 = vrot.slane %v1233, %v1237
          %v1248 = vunpack.c.l.b16 %v1225
          %v1249 = vunpack.c.l.b16 %v1226
          %v1250 = vunpack.c.l.b16 %v1227
          %v1251 = vunpack.c.l.b16 %v1228
          %v1252 = vunpack.c.l.b16 %v1229
          %v1253 = vunpack.c.l.b16 %v1230
          %v1254 = vunpack.c.l.b16 %v1231
          %v1255 = vunpack.c.l.b16 %v1232
          %v1256 = vpack.c.b16 %v1249, %v1248
          %v1257 = vpack.c.b16 %v1251, %v1250
          %v1258 = vpack.c.b16 %v1253, %v1252
          %v1259 = vpack.c.b16 %v1255, %v1254
          %vm1264 = vcmask 523264
          %v1266 = vsel %vm1264, %v1224, 0
          %1268 = vmatprep.subr.bf16.mxu0 0
          %1269 = vmatpush1.bf16.msra.mxu0 %v1256
          %1270 = vmatprep.subr.bf16.mxu0 0
          %1271 = vmatpush1.bf16.msra.mxu0 %v1257
          %1272 = vmatprep.subr.bf16.mxu0 0
          %1273 = vmatpush1.bf16.msra.mxu0 %v1258
          %1274 = vmatprep.subr.bf16.mxu0 0
          %1275 = vmatpush1.bf16.msra.mxu0 %v1259
          %1276 = vmatprep.subr.bf16.mxu0 0
          %1277 = vmatpush1.bf16.msra.mxu0 0
          %1278 = vmatprep.subr.bf16.mxu0 0
          %1279 = vmatpush1.bf16.msra.mxu0 0
          %1280 = vmatprep.subr.bf16.mxu0 0
          %1281 = vmatpush1.bf16.msra.mxu0 0
          %1282 = vmatprep.subr.bf16.mxu0 0
          %1283 = vmatpush1.bf16.msra.mxu0 0
          %1284 = vmatprep.subr.bf16.mxu0 0
          %1285 = vmatpush1.bf16.msra.mxu0 0
          %1286 = vmatprep.subr.bf16.mxu0 0
          %1287 = vmatpush1.bf16.msra.mxu0 0
          %1288 = vmatprep.subr.bf16.mxu0 0
          %1289 = vmatpush1.bf16.msra.mxu0 0
          %1290 = vmatprep.subr.bf16.mxu0 0
          %1291 = vmatpush1.bf16.msra.mxu0 0
          %1292 = vmatprep.subr.bf16.mxu0 0
          %1293 = vmatpush1.bf16.msra.mxu0 0
          %1294 = vmatprep.subr.bf16.mxu0 0
          %1295 = vmatpush1.bf16.msra.mxu0 0
          %1296 = vmatprep.subr.bf16.mxu0 0
          %1297 = vmatpush1.bf16.msra.mxu0 0
          %1298 = vmatprep.subr.bf16.mxu0 0
          %1299 = vmatpush1.bf16.msra.mxu0 0
          %1300 = vmatprep.mubr.bf16.mxu0 0
          %1301 = vmatmul.mubr.bf16.gmra.mrb[0].mxu0 %v1266
          %v1302 = vpop.f32.mrb[0].mxu0
          %v1303 = vadd.f32 %v1238, %v1302
          %v1304 = vpop.f32.mrb[0].mxu0
          %v1305 = vpop.f32.mrb[0].mxu0
          %v1306 = vpop.f32.mrb[0].mxu0
          %1307 = vdwg.mxu0
          %v1308 = vadd.f32 %v1118, %v1303
          %1309 = vst.msk [vmem:[%s457] sm:$0xff] %vm534, %v1308
        $region80: #{tpu_custom_call.1} parent=67 // pred_fallthru
          _
        %s1310 = sand.u32 %s314, 1
        %s1311 = scalar_lea.sflag [#allocation6], %s1310
        %s1312 = sand.u32 %s314, 1
        %s1313 = smul.addr %s1312, 8
        %s1314 = scalar_lea.vmem [#allocation7], %s1313
        // Predicated region
        $region81: #{tpu_custom_call.1} parent=67 // pred_check
          %p1315 = pneg %p324
        $region82: #{tpu_custom_call.1} parent=67 // pred_check_branch
          %1317 = sbr.rel (%p1315) target = $region84
        $region83: #{tpu_custom_call.1} parent=67 // pred_region
          %s1319 = ssub.s32 128, 128
          %1320 = vsyncadd %s1311, %s1319
          %s1321 = smul.addr %s31, 128
          %s1322 = scalar_lea.hbm %s12, %s1321
          %s1324 = sshll.u32 %s1314, 4
          %s1325 = int_to_ptr.vmem [resolvable:$true] %s1324
          %1327 = dma.vmem_to_hbm [thread:$0]  %s1325, 128, %s1322, %s1311
        $region84: #{tpu_custom_call.1} parent=67 // pred_fallthru
          _
      $region68: #{tpu_custom_call.1} parent=5 // pred_fallthru
        _
      %p1328 = scmp.le.s32.totalorder 2, %s22
      // Predicated region
      $region85: #{tpu_custom_call.1} parent=5 // pred_check
        %p1329 = pneg %p1328
      $region86: #{tpu_custom_call.1} parent=5 // pred_check_branch
        %1331 = sbr.rel (%p1329) target = $region88
      $region87: #{tpu_custom_call.1} parent=5 // pred_region
        %s1332 = ssub.s32 %s22, 2
        // Predicated region
        $region89: #{tpu_custom_call.1} parent=87 // pred_check
          %p1333 = pneg %p330
        $region90: #{tpu_custom_call.1} parent=87 // pred_check_branch
          %1335 = sbr.rel (%p1333) target = $region92
        $region91: #{tpu_custom_call.1} parent=87 // pred_region
          %s1336 = sand.u32 %s315, 1
          %s1337 = scalar_lea.sflag [#allocation6], %s1336
          %s1338 = sand.u32 %s315, 1
          %s1339 = smul.addr %s1338, 8
          %s1340 = scalar_lea.vmem [#allocation7], %s1339
          %1341 = dma.done %s1337, 128
        $region92: #{tpu_custom_call.1} parent=87 // pred_fallthru
          _
      $region88: #{tpu_custom_call.1} parent=5 // pred_fallthru
        _
    $region6: #{tpu_custom_call.1} parent=1 // loop_footer
      %s26 = sadd.s32 1, %s22
    $region7: #{tpu_custom_call.1} parent=1 // loop_footer_branch
      %21 = sbr.rel target = $region3
    $region8: #{tpu_custom_call.1} parent=1 // loop_exit
      _
    %1342 = vsyncpa [#allocation5], 1
    %s1343 = scalar_lea.sflag [#allocation5], 1
    %1344 = vsyncpa %s1343, 1
    %1345 = vsyncpa [#allocation6], 1
    %s1346 = scalar_lea.sflag [#allocation6], 1
    %1347 = vsyncpa %s1346, 1

</llo_original>
